<compile_context>
chip_gen: v5e
topology: v5e:2x2
jax: 0.10.0
libtpu: 0.0.40
codegen_flags: <defaults>
</compile_context>

<pallas_src>
import jax
import jax.numpy as jnp
from jax import lax
from jax.experimental import pallas as pl
from jax.experimental.pallas import tpu as pltpu

# ---- small, self-consistent config -------------------------------------------------
VOCAB = 100
B = 2
S = 8
H = 32            # num_hiddens of the (small) BERT encoder
NUM_HEADS = 2
D_HEAD = H // NUM_HEADS
FFN = 64          # ffn_num_hiddens
NUM_LAYERS = 2
MLP = 256         # bert.hidden = Linear(H, 256) + Tanh  (self.output = Linear(256, 3))
NUM_CLASSES = 3
OUT_PAD = 128     # lane-dense padded width of the classifier output block
MAX_LEN = 16
LN_EPS = 1e-5     # torch.nn.LayerNorm default eps


def _layer_norm(x, w, b):
    mean = jnp.mean(x, axis=-1, keepdims=True)
    var = jnp.mean((x - mean) ** 2, axis=-1, keepdims=True)
    return (x - mean) * lax.rsqrt(var + LN_EPS) * w + b


# ---- single fused Pallas kernel ------------------------------------------------------
def bert_fwd_kernel(x_ref, maskb_ref,
                    wqkv_ref, bqkv_ref, wo_ref, bo_ref,
                    ln1w_ref, ln1b_ref, w1_ref, b1_ref, w2_ref, b2_ref,
                    ln2w_ref, ln2b_ref,
                    hw_ref, hb_ref, ow_ref, ob_ref,
                    out_ref):
    """Both EncoderBlocks (MHA -> AddNorm -> FFN -> AddNorm) + Tanh MLP head, fused."""
    x = x_ref[...]                                   # (B, S, H) f32 embeddings
    b, s, h = x.shape
    xf = x.reshape(b * s, h)                         # flatten: 2-D matmuls throughout
    mask_bias = maskb_ref[...]                       # (B, 1, S) additive: 0 valid / -1e6 pad

    n_layers = wqkv_ref.shape[0]
    for l in range(n_layers):                        # static unroll over layers
        # ---- fused QKV projection (Q-part pre-scaled by 1/sqrt(d_head)) ----
        qkv = jnp.dot(xf, wqkv_ref[l],
                      preferred_element_type=jnp.float32) + bqkv_ref[l]   # (B*S, 3H)

        # ---- multi-head attention (static per-head loop, NUM_HEADS == 2) ----
        wo = wo_ref[l]                               # (H, H)
        attn_acc = jnp.zeros((b * s, h), jnp.float32)
        for hd in range(NUM_HEADS):
            lo = hd * D_HEAD
            qh = qkv[:, lo:lo + D_HEAD].reshape(b, s, D_HEAD)
            kh = qkv[:, h + lo:h + lo + D_HEAD].reshape(b, s, D_HEAD)
            vh = qkv[:, 2 * h + lo:2 * h + lo + D_HEAD].reshape(b, s, D_HEAD)

            scores = jnp.einsum('bqd,bkd->bqk', qh, kh,
                                preferred_element_type=jnp.float32)       # (B, S, S)
            scores = scores + mask_bias              # d2l masked_softmax (additive form)
            m = jnp.max(scores, axis=-1, keepdims=True)
            e = jnp.exp(scores - m)
            p = e * pl.reciprocal(jnp.sum(e, axis=-1, keepdims=True), approx=True)

            oh = jnp.einsum('bqk,bkd->bqd', p, vh,
                            preferred_element_type=jnp.float32).reshape(b * s, D_HEAD)
            # concat over heads then @ W_o  ==  sum_h  oh @ W_o[h*dh:(h+1)*dh, :]
            attn_acc = attn_acc + jnp.dot(oh, wo[lo:lo + D_HEAD, :],
                                          preferred_element_type=jnp.float32)
        attn_out = attn_acc + bo_ref[l]

        # ---- AddNorm 1 (dropout == identity in eval mode) ----
        y = _layer_norm(xf + attn_out, ln1w_ref[l], ln1b_ref[l])

        # ---- PositionWiseFFN: Linear -> ReLU -> Linear ----
        hid = jnp.dot(y, w1_ref[l], preferred_element_type=jnp.float32) + b1_ref[l]
        hid = jnp.maximum(hid, 0.0)
        ffn = jnp.dot(hid, w2_ref[l], preferred_element_type=jnp.float32) + b2_ref[l]

        # ---- AddNorm 2 ----
        xf = _layer_norm(y + ffn, ln2w_ref[l], ln2b_ref[l])

    # ---- classifier head on the [CLS] token: Linear -> Tanh -> Linear (lane-padded) ----
    cls = xf.reshape(b, s, h)[:, 0, :]               # (B, H)  == encoded_X[:, 0, :]
    hid = jnp.tanh(jnp.dot(cls, hw_ref[...],
                           preferred_element_type=jnp.float32) + hb_ref[...])
    out_ref[...] = jnp.dot(hid, ow_ref[...],
                           preferred_element_type=jnp.float32) + ob_ref[...]


# Whole (tiny) arrays fit comfortably in VMEM: full-array VMEM blocks, no grid.
# TODO(synk): at real BERT sizes (H=768, S=512) this needs a (batch, seq-tile) grid
# with "parallel" semantics (v7x: 2 TCs, 64 MiB VMEM) instead of whole-array blocks.
_VMEM = pl.BlockSpec(memory_space=pltpu.MemorySpace.VMEM)


# ---- parameters (deterministic synthetic init) --------------------------------------
def init_params(key):
    ks = iter(jax.random.split(key, 8 + NUM_LAYERS * 8))

    def nrm(shape, scale=0.02):
        return jax.random.normal(next(ks), shape, jnp.float32) * scale

    params = {
        'tok_emb': nrm((VOCAB, H), 1.0),
        'seg_emb': nrm((2, H), 1.0),
        'pos_emb': nrm((MAX_LEN, H), 1.0),
        'hidden_w': nrm((H, MLP)), 'hidden_b': jnp.zeros((1, MLP), jnp.float32),
        'out_w': nrm((MLP, NUM_CLASSES)), 'out_b': jnp.zeros((1, NUM_CLASSES), jnp.float32),
        'layers': [],
    }
    for _ in range(NUM_LAYERS):
        params['layers'].append({
            'wq': nrm((H, H)), 'bq': jnp.zeros((1, H), jnp.float32),
            'wk': nrm((H, H)), 'bk': jnp.zeros((1, H), jnp.float32),
            'wv': nrm((H, H)), 'bv': jnp.zeros((1, H), jnp.float32),
            'wo': nrm((H, H)), 'bo': jnp.zeros((1, H), jnp.float32),
            'ln1w': jnp.ones((1, H), jnp.float32), 'ln1b': jnp.zeros((1, H), jnp.float32),
            'w1': nrm((H, FFN)), 'b1': jnp.zeros((1, FFN), jnp.float32),
            'w2': nrm((FFN, H)), 'b2': jnp.zeros((1, H), jnp.float32),
            'ln2w': jnp.ones((1, H), jnp.float32), 'ln2b': jnp.zeros((1, H), jnp.float32),
        })
    return params


def fuse_params(p):
    """Stack per-layer weights (leading layer dim), fuse QKV, fold 1/sqrt(d_head) into
    the Q weights/bias, and lane-pad the classifier output weights to OUT_PAD."""
    inv = jnp.float32(1.0) / jnp.sqrt(jnp.float32(D_HEAD))

    def st(name):
        return jnp.stack([lp[name] for lp in p['layers']], axis=0)

    wqkv = jnp.stack([jnp.concatenate([lp['wq'] * inv, lp['wk'], lp['wv']], axis=1)
                      for lp in p['layers']], axis=0)                    # (L, H, 3H)
    bqkv = jnp.stack([jnp.concatenate([lp['bq'] * inv, lp['bk'], lp['bv']], axis=1)
                      for lp in p['layers']], axis=0)                    # (L, 1, 3H)
    ow_pad = jnp.zeros((MLP, OUT_PAD), jnp.float32).at[:, :NUM_CLASSES].set(p['out_w'])
    ob_pad = jnp.zeros((1, OUT_PAD), jnp.float32).at[:, :NUM_CLASSES].set(p['out_b'])
    return {
        'tok_emb': p['tok_emb'], 'seg_emb': p['seg_emb'], 'pos_emb': p['pos_emb'],
        'wqkv': wqkv, 'bqkv': bqkv,
        'wo': st('wo'), 'bo': st('bo'),
        'ln1w': st('ln1w'), 'ln1b': st('ln1b'),
        'w1': st('w1'), 'b1': st('b1'), 'w2': st('w2'), 'b2': st('b2'),
        'ln2w': st('ln2w'), 'ln2b': st('ln2b'),
        'hw': p['hidden_w'], 'hb': p['hidden_b'],
        'ow': ow_pad, 'ob': ob_pad,
    }


# ---- forward pass: embedding gathers in JAX glue, everything else in ONE kernel -----
# TODO(synk): the token/segment/position embedding gathers stay in plain JAX; a Pallas
# DMA-gather is not worth it at this scale.
@jax.jit
def bert_classifier_forward(fp, tokens, segments, valid_lens):
    # BERTEncoder embeddings: token + segment + positional.
    x = (fp['tok_emb'][tokens]
         + fp['seg_emb'][segments]
         + fp['pos_emb'][: tokens.shape[1]][None, :, :]).astype(jnp.float32)

    # Valid-lens additive key-mask bias, computed once for all layers:
    # (B, 1, S), 0.0 for valid keys and -1e6 for padded keys (d2l masked_softmax).
    key_pos = jnp.arange(tokens.shape[1], dtype=jnp.float32).reshape(1, 1, -1)
    valid = (key_pos < valid_lens.astype(jnp.float32).reshape(-1, 1, 1))
    mask_bias = jnp.where(valid, 0.0, -1e6).astype(jnp.float32)

    args = (x, mask_bias,
            fp['wqkv'], fp['bqkv'], fp['wo'], fp['bo'],
            fp['ln1w'], fp['ln1b'], fp['w1'], fp['b1'], fp['w2'], fp['b2'],
            fp['ln2w'], fp['ln2b'],
            fp['hw'], fp['hb'], fp['ow'], fp['ob'])

    padded = pl.pallas_call(
        bert_fwd_kernel,
        out_shape=jax.ShapeDtypeStruct((tokens.shape[0], OUT_PAD), jnp.float32),
        in_specs=[_VMEM] * len(args),
        out_specs=_VMEM,
    )(*args)
    return padded[:, :NUM_CLASSES]                   # slice lane-padded logits to 3


if __name__ == "__main__":
    key = jax.random.PRNGKey(0)
    kp, kt = jax.random.split(key, 2)
    params = fuse_params(init_params(kp))

    tokens = jax.random.randint(kt, (B, S), 0, VOCAB, dtype=jnp.int32)
    segments = jnp.concatenate(
        [jnp.zeros((B, S // 2), jnp.int32), jnp.ones((B, S // 2), jnp.int32)], axis=1)
    valid_lens = jnp.array([S, S - 3], dtype=jnp.int32)

    logits = bert_classifier_forward(params, tokens, segments, valid_lens)
    jax.block_until_ready(logits)
    assert logits.shape == (B, NUM_CLASSES) and logits.dtype == jnp.float32
    print("KERNEL_OK")
</pallas_src>

<mosaic_0001>
module attributes {stable_mosaic.version = 11 : i64} {
  func.func @bert_fwd_kernel(%arg0: memref<2x8x32xf32, #tpu.memory_space<vmem>>, %arg1: memref<2x1x8xf32, #tpu.memory_space<vmem>>, %arg2: memref<2x32x96xf32, #tpu.memory_space<vmem>>, %arg3: memref<2x1x96xf32, #tpu.memory_space<vmem>>, %arg4: memref<2x32x32xf32, #tpu.memory_space<vmem>>, %arg5: memref<2x1x32xf32, #tpu.memory_space<vmem>>, %arg6: memref<2x1x32xf32, #tpu.memory_space<vmem>>, %arg7: memref<2x1x32xf32, #tpu.memory_space<vmem>>, %arg8: memref<2x32x64xf32, #tpu.memory_space<vmem>>, %arg9: memref<2x1x64xf32, #tpu.memory_space<vmem>>, %arg10: memref<2x64x32xf32, #tpu.memory_space<vmem>>, %arg11: memref<2x1x32xf32, #tpu.memory_space<vmem>>, %arg12: memref<2x1x32xf32, #tpu.memory_space<vmem>>, %arg13: memref<2x1x32xf32, #tpu.memory_space<vmem>>, %arg14: memref<32x256xf32, #tpu.memory_space<vmem>>, %arg15: memref<1x256xf32, #tpu.memory_space<vmem>>, %arg16: memref<256x128xf32, #tpu.memory_space<vmem>>, %arg17: memref<1x128xf32, #tpu.memory_space<vmem>>, %arg18: memref<2x128xf32, #tpu.memory_space<vmem>>) attributes {dimension_semantics = [], scalar_prefetch = 0 : i64, scratch_operands = 0 : i64, tpu.core_type = #tpu.core_type<tc>} {
    %c0 = arith.constant 0 : index
    %c0_0 = arith.constant 0 : index
    %c0_1 = arith.constant 0 : index
    %0 = vector.load %arg0[%c0, %c0_0, %c0_1] : memref<2x8x32xf32, #tpu.memory_space<vmem>>, vector<2x8x32xf32>
    %1 = vector.shape_cast %0 : vector<2x8x32xf32> to vector<16x32xf32>
    %c0_2 = arith.constant 0 : index
    %c0_3 = arith.constant 0 : index
    %c0_4 = arith.constant 0 : index
    %2 = vector.load %arg1[%c0_2, %c0_3, %c0_4] : memref<2x1x8xf32, #tpu.memory_space<vmem>>, vector<2x1x8xf32>
    %c0_5 = arith.constant 0 : index
    %c0_6 = arith.constant 0 : index
    %c0_7 = arith.constant 0 : index
    %3 = vector.load %arg2[%c0_5, %c0_6, %c0_7] : memref<2x32x96xf32, #tpu.memory_space<vmem>>, vector<1x32x96xf32>
    %4 = vector.shape_cast %3 : vector<1x32x96xf32> to vector<32x96xf32>
    %cst = arith.constant dense<0.000000e+00> : vector<16x96xf32>
    %5 = tpu.matmul %1, %4, %cst {dimension_numbers = #tpu.dot_dimension_numbers<[1], [0], [0], [1], [0, 0, 1, 1], [], []>} : vector<16x32xf32>, vector<32x96xf32>, vector<16x96xf32> -> vector<16x96xf32>
    %c0_8 = arith.constant 0 : index
    %c0_9 = arith.constant 0 : index
    %c0_10 = arith.constant 0 : index
    %6 = vector.load %arg3[%c0_8, %c0_9, %c0_10] : memref<2x1x96xf32, #tpu.memory_space<vmem>>, vector<1x1x96xf32>
    %7 = vector.shape_cast %6 : vector<1x1x96xf32> to vector<1x96xf32>
    %8 = vector.broadcast %7 : vector<1x96xf32> to vector<16x96xf32>
    %9 = arith.addf %5, %8 : vector<16x96xf32>
    %c0_11 = arith.constant 0 : index
    %c0_12 = arith.constant 0 : index
    %c0_13 = arith.constant 0 : index
    %10 = vector.load %arg4[%c0_11, %c0_12, %c0_13] : memref<2x32x32xf32, #tpu.memory_space<vmem>>, vector<1x32x32xf32>
    %11 = vector.shape_cast %10 : vector<1x32x32xf32> to vector<32x32xf32>
    %cst_14 = arith.constant 0.000000e+00 : f32
    %12 = vector.broadcast %cst_14 : f32 to vector<16x32xf32>
    %13 = vector.extract_strided_slice %9 {offsets = [0, 0], sizes = [16, 16], strides = [1, 1]} : vector<16x96xf32> to vector<16x16xf32>
    %14 = vector.shape_cast %13 : vector<16x16xf32> to vector<2x8x16xf32>
    %15 = vector.extract_strided_slice %9 {offsets = [0, 32], sizes = [16, 16], strides = [1, 1]} : vector<16x96xf32> to vector<16x16xf32>
    %16 = vector.shape_cast %15 : vector<16x16xf32> to vector<2x8x16xf32>
    %17 = vector.extract_strided_slice %9 {offsets = [0, 64], sizes = [16, 16], strides = [1, 1]} : vector<16x96xf32> to vector<16x16xf32>
    %18 = vector.shape_cast %17 : vector<16x16xf32> to vector<2x8x16xf32>
    "tpu.trace_start"() <{level = 10 : i32, message = "bqd,bkd->bqk"}> : () -> ()
    %cst_15 = arith.constant dense<0.000000e+00> : vector<2x8x8xf32>
    %19 = tpu.matmul %14, %16, %cst_15 {dimension_numbers = #tpu.dot_dimension_numbers<[2], [2], [1], [1], [0, 0, 0, 1, 1, 1], [0], [0]>} : vector<2x8x16xf32>, vector<2x8x16xf32>, vector<2x8x8xf32> -> vector<2x8x8xf32>
    "tpu.trace_stop"() : () -> ()
    %20 = vector.broadcast %2 : vector<2x1x8xf32> to vector<2x8x8xf32>
    %21 = arith.addf %19, %20 : vector<2x8x8xf32>
    %cst_16 = arith.constant dense<0xFF800000> : vector<2x8xf32>
    %22 = vector.multi_reduction <maximumf>, %21, %cst_16 [2] : vector<2x8x8xf32> to vector<2x8xf32>
    %23 = vector.shape_cast %22 : vector<2x8xf32> to vector<2x8x1xf32>
    %24 = vector.broadcast %23 : vector<2x8x1xf32> to vector<2x8x8xf32>
    %25 = arith.subf %21, %24 : vector<2x8x8xf32>
    %26 = math.exp %25 : vector<2x8x8xf32>
    %cst_17 = arith.constant dense<0.000000e+00> : vector<2x8xf32>
    %27 = vector.multi_reduction <add>, %26, %cst_17 [2] : vector<2x8x8xf32> to vector<2x8xf32>
    %28 = vector.shape_cast %27 : vector<2x8xf32> to vector<2x8x1xf32>
    %29 = tpu.reciprocal %28 {approx = true} : vector<2x8x1xf32> -> vector<2x8x1xf32>
    %30 = vector.broadcast %29 : vector<2x8x1xf32> to vector<2x8x8xf32>
    %31 = arith.mulf %26, %30 : vector<2x8x8xf32>
    "tpu.trace_start"() <{level = 10 : i32, message = "bqk,bkd->bqd"}> : () -> ()
    %cst_18 = arith.constant dense<0.000000e+00> : vector<2x8x16xf32>
    %32 = tpu.matmul %31, %18, %cst_18 {dimension_numbers = #tpu.dot_dimension_numbers<[2], [1], [1], [2], [0, 0, 0, 1, 1, 2], [0], [0]>} : vector<2x8x8xf32>, vector<2x8x16xf32>, vector<2x8x16xf32> -> vector<2x8x16xf32>
    "tpu.trace_stop"() : () -> ()
    %33 = vector.shape_cast %32 : vector<2x8x16xf32> to vector<16x16xf32>
    %34 = vector.extract_strided_slice %11 {offsets = [0, 0], sizes = [16, 32], strides = [1, 1]} : vector<32x32xf32> to vector<16x32xf32>
    %cst_19 = arith.constant dense<0.000000e+00> : vector<16x32xf32>
    %35 = tpu.matmul %33, %34, %cst_19 {dimension_numbers = #tpu.dot_dimension_numbers<[1], [0], [0], [1], [0, 0, 1, 1], [], []>} : vector<16x16xf32>, vector<16x32xf32>, vector<16x32xf32> -> vector<16x32xf32>
    %36 = arith.addf %12, %35 : vector<16x32xf32>
    %37 = vector.extract_strided_slice %9 {offsets = [0, 16], sizes = [16, 16], strides = [1, 1]} : vector<16x96xf32> to vector<16x16xf32>
    %38 = vector.shape_cast %37 : vector<16x16xf32> to vector<2x8x16xf32>
    %39 = vector.extract_strided_slice %9 {offsets = [0, 48], sizes = [16, 16], strides = [1, 1]} : vector<16x96xf32> to vector<16x16xf32>
    %40 = vector.shape_cast %39 : vector<16x16xf32> to vector<2x8x16xf32>
    %41 = vector.extract_strided_slice %9 {offsets = [0, 80], sizes = [16, 16], strides = [1, 1]} : vector<16x96xf32> to vector<16x16xf32>
    %42 = vector.shape_cast %41 : vector<16x16xf32> to vector<2x8x16xf32>
    "tpu.trace_start"() <{level = 10 : i32, message = "bqd,bkd->bqk"}> : () -> ()
    %cst_20 = arith.constant dense<0.000000e+00> : vector<2x8x8xf32>
    %43 = tpu.matmul %38, %40, %cst_20 {dimension_numbers = #tpu.dot_dimension_numbers<[2], [2], [1], [1], [0, 0, 0, 1, 1, 1], [0], [0]>} : vector<2x8x16xf32>, vector<2x8x16xf32>, vector<2x8x8xf32> -> vector<2x8x8xf32>
    "tpu.trace_stop"() : () -> ()
    %44 = vector.broadcast %2 : vector<2x1x8xf32> to vector<2x8x8xf32>
    %45 = arith.addf %43, %44 : vector<2x8x8xf32>
    %cst_21 = arith.constant dense<0xFF800000> : vector<2x8xf32>
    %46 = vector.multi_reduction <maximumf>, %45, %cst_21 [2] : vector<2x8x8xf32> to vector<2x8xf32>
    %47 = vector.shape_cast %46 : vector<2x8xf32> to vector<2x8x1xf32>
    %48 = vector.broadcast %47 : vector<2x8x1xf32> to vector<2x8x8xf32>
    %49 = arith.subf %45, %48 : vector<2x8x8xf32>
    %50 = math.exp %49 : vector<2x8x8xf32>
    %cst_22 = arith.constant dense<0.000000e+00> : vector<2x8xf32>
    %51 = vector.multi_reduction <add>, %50, %cst_22 [2] : vector<2x8x8xf32> to vector<2x8xf32>
    %52 = vector.shape_cast %51 : vector<2x8xf32> to vector<2x8x1xf32>
    %53 = tpu.reciprocal %52 {approx = true} : vector<2x8x1xf32> -> vector<2x8x1xf32>
    %54 = vector.broadcast %53 : vector<2x8x1xf32> to vector<2x8x8xf32>
    %55 = arith.mulf %50, %54 : vector<2x8x8xf32>
    "tpu.trace_start"() <{level = 10 : i32, message = "bqk,bkd->bqd"}> : () -> ()
    %cst_23 = arith.constant dense<0.000000e+00> : vector<2x8x16xf32>
    %56 = tpu.matmul %55, %42, %cst_23 {dimension_numbers = #tpu.dot_dimension_numbers<[2], [1], [1], [2], [0, 0, 0, 1, 1, 2], [0], [0]>} : vector<2x8x8xf32>, vector<2x8x16xf32>, vector<2x8x16xf32> -> vector<2x8x16xf32>
    "tpu.trace_stop"() : () -> ()
    %57 = vector.shape_cast %56 : vector<2x8x16xf32> to vector<16x16xf32>
    %58 = vector.extract_strided_slice %11 {offsets = [16, 0], sizes = [16, 32], strides = [1, 1]} : vector<32x32xf32> to vector<16x32xf32>
    %cst_24 = arith.constant dense<0.000000e+00> : vector<16x32xf32>
    %59 = tpu.matmul %57, %58, %cst_24 {dimension_numbers = #tpu.dot_dimension_numbers<[1], [0], [0], [1], [0, 0, 1, 1], [], []>} : vector<16x16xf32>, vector<16x32xf32>, vector<16x32xf32> -> vector<16x32xf32>
    %60 = arith.addf %36, %59 : vector<16x32xf32>
    %c0_25 = arith.constant 0 : index
    %c0_26 = arith.constant 0 : index
    %c0_27 = arith.constant 0 : index
    %61 = vector.load %arg5[%c0_25, %c0_26, %c0_27] : memref<2x1x32xf32, #tpu.memory_space<vmem>>, vector<1x1x32xf32>
    %62 = vector.shape_cast %61 : vector<1x1x32xf32> to vector<1x32xf32>
    %63 = vector.broadcast %62 : vector<1x32xf32> to vector<16x32xf32>
    %64 = arith.addf %60, %63 : vector<16x32xf32>
    %65 = arith.addf %1, %64 : vector<16x32xf32>
    %c0_28 = arith.constant 0 : index
    %c0_29 = arith.constant 0 : index
    %c0_30 = arith.constant 0 : index
    %66 = vector.load %arg6[%c0_28, %c0_29, %c0_30] : memref<2x1x32xf32, #tpu.memory_space<vmem>>, vector<1x1x32xf32>
    %67 = vector.shape_cast %66 : vector<1x1x32xf32> to vector<1x32xf32>
    %c0_31 = arith.constant 0 : index
    %c0_32 = arith.constant 0 : index
    %c0_33 = arith.constant 0 : index
    %68 = vector.load %arg7[%c0_31, %c0_32, %c0_33] : memref<2x1x32xf32, #tpu.memory_space<vmem>>, vector<1x1x32xf32>
    %69 = vector.shape_cast %68 : vector<1x1x32xf32> to vector<1x32xf32>
    %cst_34 = arith.constant dense<0.000000e+00> : vector<16xf32>
    %70 = vector.multi_reduction <add>, %65, %cst_34 [1] : vector<16x32xf32> to vector<16xf32>
    %71 = vector.shape_cast %70 : vector<16xf32> to vector<16x1xf32>
    %cst_35 = arith.constant 3.200000e+01 : f32
    %72 = vector.broadcast %cst_35 : f32 to vector<16x1xf32>
    %73 = arith.divf %71, %72 : vector<16x1xf32>
    %74 = vector.broadcast %73 : vector<16x1xf32> to vector<16x32xf32>
    %75 = arith.subf %65, %74 : vector<16x32xf32>
    %76 = arith.mulf %75, %75 : vector<16x32xf32>
    %cst_36 = arith.constant dense<0.000000e+00> : vector<16xf32>
    %77 = vector.multi_reduction <add>, %76, %cst_36 [1] : vector<16x32xf32> to vector<16xf32>
    %78 = vector.shape_cast %77 : vector<16xf32> to vector<16x1xf32>
    %cst_37 = arith.constant 3.200000e+01 : f32
    %79 = vector.broadcast %cst_37 : f32 to vector<16x1xf32>
    %80 = arith.divf %78, %79 : vector<16x1xf32>
    %81 = vector.broadcast %73 : vector<16x1xf32> to vector<16x32xf32>
    %82 = arith.subf %65, %81 : vector<16x32xf32>
    %cst_38 = arith.constant 9.99999974E-6 : f32
    %83 = vector.broadcast %cst_38 : f32 to vector<16x1xf32>
    %84 = arith.addf %80, %83 : vector<16x1xf32>
    %85 = math.rsqrt %84 : vector<16x1xf32>
    %86 = vector.broadcast %85 : vector<16x1xf32> to vector<16x32xf32>
    %87 = arith.mulf %82, %86 : vector<16x32xf32>
    %88 = vector.broadcast %67 : vector<1x32xf32> to vector<16x32xf32>
    %89 = arith.mulf %87, %88 : vector<16x32xf32>
    %90 = vector.broadcast %69 : vector<1x32xf32> to vector<16x32xf32>
    %91 = arith.addf %89, %90 : vector<16x32xf32>
    %c0_39 = arith.constant 0 : index
    %c0_40 = arith.constant 0 : index
    %c0_41 = arith.constant 0 : index
    %92 = vector.load %arg8[%c0_39, %c0_40, %c0_41] : memref<2x32x64xf32, #tpu.memory_space<vmem>>, vector<1x32x64xf32>
    %93 = vector.shape_cast %92 : vector<1x32x64xf32> to vector<32x64xf32>
    %cst_42 = arith.constant dense<0.000000e+00> : vector<16x64xf32>
    %94 = tpu.matmul %91, %93, %cst_42 {dimension_numbers = #tpu.dot_dimension_numbers<[1], [0], [0], [1], [0, 0, 1, 1], [], []>} : vector<16x32xf32>, vector<32x64xf32>, vector<16x64xf32> -> vector<16x64xf32>
    %c0_43 = arith.constant 0 : index
    %c0_44 = arith.constant 0 : index
    %c0_45 = arith.constant 0 : index
    %95 = vector.load %arg9[%c0_43, %c0_44, %c0_45] : memref<2x1x64xf32, #tpu.memory_space<vmem>>, vector<1x1x64xf32>
    %96 = vector.shape_cast %95 : vector<1x1x64xf32> to vector<1x64xf32>
    %97 = vector.broadcast %96 : vector<1x64xf32> to vector<16x64xf32>
    %98 = arith.addf %94, %97 : vector<16x64xf32>
    %cst_46 = arith.constant 0.000000e+00 : f32
    %99 = vector.broadcast %cst_46 : f32 to vector<16x64xf32>
    %100 = arith.maximumf %98, %99 : vector<16x64xf32>
    %c0_47 = arith.constant 0 : index
    %c0_48 = arith.constant 0 : index
    %c0_49 = arith.constant 0 : index
    %101 = vector.load %arg10[%c0_47, %c0_48, %c0_49] : memref<2x64x32xf32, #tpu.memory_space<vmem>>, vector<1x64x32xf32>
    %102 = vector.shape_cast %101 : vector<1x64x32xf32> to vector<64x32xf32>
    %cst_50 = arith.constant dense<0.000000e+00> : vector<16x32xf32>
    %103 = tpu.matmul %100, %102, %cst_50 {dimension_numbers = #tpu.dot_dimension_numbers<[1], [0], [0], [1], [0, 0, 1, 1], [], []>} : vector<16x64xf32>, vector<64x32xf32>, vector<16x32xf32> -> vector<16x32xf32>
    %c0_51 = arith.constant 0 : index
    %c0_52 = arith.constant 0 : index
    %c0_53 = arith.constant 0 : index
    %104 = vector.load %arg11[%c0_51, %c0_52, %c0_53] : memref<2x1x32xf32, #tpu.memory_space<vmem>>, vector<1x1x32xf32>
    %105 = vector.shape_cast %104 : vector<1x1x32xf32> to vector<1x32xf32>
    %106 = vector.broadcast %105 : vector<1x32xf32> to vector<16x32xf32>
    %107 = arith.addf %103, %106 : vector<16x32xf32>
    %108 = arith.addf %91, %107 : vector<16x32xf32>
    %c0_54 = arith.constant 0 : index
    %c0_55 = arith.constant 0 : index
    %c0_56 = arith.constant 0 : index
    %109 = vector.load %arg12[%c0_54, %c0_55, %c0_56] : memref<2x1x32xf32, #tpu.memory_space<vmem>>, vector<1x1x32xf32>
    %110 = vector.shape_cast %109 : vector<1x1x32xf32> to vector<1x32xf32>
    %c0_57 = arith.constant 0 : index
    %c0_58 = arith.constant 0 : index
    %c0_59 = arith.constant 0 : index
    %111 = vector.load %arg13[%c0_57, %c0_58, %c0_59] : memref<2x1x32xf32, #tpu.memory_space<vmem>>, vector<1x1x32xf32>
    %112 = vector.shape_cast %111 : vector<1x1x32xf32> to vector<1x32xf32>
    %cst_60 = arith.constant dense<0.000000e+00> : vector<16xf32>
    %113 = vector.multi_reduction <add>, %108, %cst_60 [1] : vector<16x32xf32> to vector<16xf32>
    %114 = vector.shape_cast %113 : vector<16xf32> to vector<16x1xf32>
    %cst_61 = arith.constant 3.200000e+01 : f32
    %115 = vector.broadcast %cst_61 : f32 to vector<16x1xf32>
    %116 = arith.divf %114, %115 : vector<16x1xf32>
    %117 = vector.broadcast %116 : vector<16x1xf32> to vector<16x32xf32>
    %118 = arith.subf %108, %117 : vector<16x32xf32>
    %119 = arith.mulf %118, %118 : vector<16x32xf32>
    %cst_62 = arith.constant dense<0.000000e+00> : vector<16xf32>
    %120 = vector.multi_reduction <add>, %119, %cst_62 [1] : vector<16x32xf32> to vector<16xf32>
    %121 = vector.shape_cast %120 : vector<16xf32> to vector<16x1xf32>
    %cst_63 = arith.constant 3.200000e+01 : f32
    %122 = vector.broadcast %cst_63 : f32 to vector<16x1xf32>
    %123 = arith.divf %121, %122 : vector<16x1xf32>
    %124 = vector.broadcast %116 : vector<16x1xf32> to vector<16x32xf32>
    %125 = arith.subf %108, %124 : vector<16x32xf32>
    %cst_64 = arith.constant 9.99999974E-6 : f32
    %126 = vector.broadcast %cst_64 : f32 to vector<16x1xf32>
    %127 = arith.addf %123, %126 : vector<16x1xf32>
    %128 = math.rsqrt %127 : vector<16x1xf32>
    %129 = vector.broadcast %128 : vector<16x1xf32> to vector<16x32xf32>
    %130 = arith.mulf %125, %129 : vector<16x32xf32>
    %131 = vector.broadcast %110 : vector<1x32xf32> to vector<16x32xf32>
    %132 = arith.mulf %130, %131 : vector<16x32xf32>
    %133 = vector.broadcast %112 : vector<1x32xf32> to vector<16x32xf32>
    %134 = arith.addf %132, %133 : vector<16x32xf32>
    %c1 = arith.constant 1 : index
    %c0_65 = arith.constant 0 : index
    %c0_66 = arith.constant 0 : index
    %135 = vector.load %arg2[%c1, %c0_65, %c0_66] : memref<2x32x96xf32, #tpu.memory_space<vmem>>, vector<1x32x96xf32>
    %136 = vector.shape_cast %135 : vector<1x32x96xf32> to vector<32x96xf32>
    %cst_67 = arith.constant dense<0.000000e+00> : vector<16x96xf32>
    %137 = tpu.matmul %134, %136, %cst_67 {dimension_numbers = #tpu.dot_dimension_numbers<[1], [0], [0], [1], [0, 0, 1, 1], [], []>} : vector<16x32xf32>, vector<32x96xf32>, vector<16x96xf32> -> vector<16x96xf32>
    %c1_68 = arith.constant 1 : index
    %c0_69 = arith.constant 0 : index
    %c0_70 = arith.constant 0 : index
    %138 = vector.load %arg3[%c1_68, %c0_69, %c0_70] : memref<2x1x96xf32, #tpu.memory_space<vmem>>, vector<1x1x96xf32>
    %139 = vector.shape_cast %138 : vector<1x1x96xf32> to vector<1x96xf32>
    %140 = vector.broadcast %139 : vector<1x96xf32> to vector<16x96xf32>
    %141 = arith.addf %137, %140 : vector<16x96xf32>
    %c1_71 = arith.constant 1 : index
    %c0_72 = arith.constant 0 : index
    %c0_73 = arith.constant 0 : index
    %142 = vector.load %arg4[%c1_71, %c0_72, %c0_73] : memref<2x32x32xf32, #tpu.memory_space<vmem>>, vector<1x32x32xf32>
    %143 = vector.shape_cast %142 : vector<1x32x32xf32> to vector<32x32xf32>
    %cst_74 = arith.constant 0.000000e+00 : f32
    %144 = vector.broadcast %cst_74 : f32 to vector<16x32xf32>
    %145 = vector.extract_strided_slice %141 {offsets = [0, 0], sizes = [16, 16], strides = [1, 1]} : vector<16x96xf32> to vector<16x16xf32>
    %146 = vector.shape_cast %145 : vector<16x16xf32> to vector<2x8x16xf32>
    %147 = vector.extract_strided_slice %141 {offsets = [0, 32], sizes = [16, 16], strides = [1, 1]} : vector<16x96xf32> to vector<16x16xf32>
    %148 = vector.shape_cast %147 : vector<16x16xf32> to vector<2x8x16xf32>
    %149 = vector.extract_strided_slice %141 {offsets = [0, 64], sizes = [16, 16], strides = [1, 1]} : vector<16x96xf32> to vector<16x16xf32>
    %150 = vector.shape_cast %149 : vector<16x16xf32> to vector<2x8x16xf32>
    "tpu.trace_start"() <{level = 10 : i32, message = "bqd,bkd->bqk"}> : () -> ()
    %cst_75 = arith.constant dense<0.000000e+00> : vector<2x8x8xf32>
    %151 = tpu.matmul %146, %148, %cst_75 {dimension_numbers = #tpu.dot_dimension_numbers<[2], [2], [1], [1], [0, 0, 0, 1, 1, 1], [0], [0]>} : vector<2x8x16xf32>, vector<2x8x16xf32>, vector<2x8x8xf32> -> vector<2x8x8xf32>
    "tpu.trace_stop"() : () -> ()
    %152 = vector.broadcast %2 : vector<2x1x8xf32> to vector<2x8x8xf32>
    %153 = arith.addf %151, %152 : vector<2x8x8xf32>
    %cst_76 = arith.constant dense<0xFF800000> : vector<2x8xf32>
    %154 = vector.multi_reduction <maximumf>, %153, %cst_76 [2] : vector<2x8x8xf32> to vector<2x8xf32>
    %155 = vector.shape_cast %154 : vector<2x8xf32> to vector<2x8x1xf32>
    %156 = vector.broadcast %155 : vector<2x8x1xf32> to vector<2x8x8xf32>
    %157 = arith.subf %153, %156 : vector<2x8x8xf32>
    %158 = math.exp %157 : vector<2x8x8xf32>
    %cst_77 = arith.constant dense<0.000000e+00> : vector<2x8xf32>
    %159 = vector.multi_reduction <add>, %158, %cst_77 [2] : vector<2x8x8xf32> to vector<2x8xf32>
    %160 = vector.shape_cast %159 : vector<2x8xf32> to vector<2x8x1xf32>
    %161 = tpu.reciprocal %160 {approx = true} : vector<2x8x1xf32> -> vector<2x8x1xf32>
    %162 = vector.broadcast %161 : vector<2x8x1xf32> to vector<2x8x8xf32>
    %163 = arith.mulf %158, %162 : vector<2x8x8xf32>
    "tpu.trace_start"() <{level = 10 : i32, message = "bqk,bkd->bqd"}> : () -> ()
    %cst_78 = arith.constant dense<0.000000e+00> : vector<2x8x16xf32>
    %164 = tpu.matmul %163, %150, %cst_78 {dimension_numbers = #tpu.dot_dimension_numbers<[2], [1], [1], [2], [0, 0, 0, 1, 1, 2], [0], [0]>} : vector<2x8x8xf32>, vector<2x8x16xf32>, vector<2x8x16xf32> -> vector<2x8x16xf32>
    "tpu.trace_stop"() : () -> ()
    %165 = vector.shape_cast %164 : vector<2x8x16xf32> to vector<16x16xf32>
    %166 = vector.extract_strided_slice %143 {offsets = [0, 0], sizes = [16, 32], strides = [1, 1]} : vector<32x32xf32> to vector<16x32xf32>
    %cst_79 = arith.constant dense<0.000000e+00> : vector<16x32xf32>
    %167 = tpu.matmul %165, %166, %cst_79 {dimension_numbers = #tpu.dot_dimension_numbers<[1], [0], [0], [1], [0, 0, 1, 1], [], []>} : vector<16x16xf32>, vector<16x32xf32>, vector<16x32xf32> -> vector<16x32xf32>
    %168 = arith.addf %144, %167 : vector<16x32xf32>
    %169 = vector.extract_strided_slice %141 {offsets = [0, 16], sizes = [16, 16], strides = [1, 1]} : vector<16x96xf32> to vector<16x16xf32>
    %170 = vector.shape_cast %169 : vector<16x16xf32> to vector<2x8x16xf32>
    %171 = vector.extract_strided_slice %141 {offsets = [0, 48], sizes = [16, 16], strides = [1, 1]} : vector<16x96xf32> to vector<16x16xf32>
    %172 = vector.shape_cast %171 : vector<16x16xf32> to vector<2x8x16xf32>
    %173 = vector.extract_strided_slice %141 {offsets = [0, 80], sizes = [16, 16], strides = [1, 1]} : vector<16x96xf32> to vector<16x16xf32>
    %174 = vector.shape_cast %173 : vector<16x16xf32> to vector<2x8x16xf32>
    "tpu.trace_start"() <{level = 10 : i32, message = "bqd,bkd->bqk"}> : () -> ()
    %cst_80 = arith.constant dense<0.000000e+00> : vector<2x8x8xf32>
    %175 = tpu.matmul %170, %172, %cst_80 {dimension_numbers = #tpu.dot_dimension_numbers<[2], [2], [1], [1], [0, 0, 0, 1, 1, 1], [0], [0]>} : vector<2x8x16xf32>, vector<2x8x16xf32>, vector<2x8x8xf32> -> vector<2x8x8xf32>
    "tpu.trace_stop"() : () -> ()
    %176 = vector.broadcast %2 : vector<2x1x8xf32> to vector<2x8x8xf32>
    %177 = arith.addf %175, %176 : vector<2x8x8xf32>
    %cst_81 = arith.constant dense<0xFF800000> : vector<2x8xf32>
    %178 = vector.multi_reduction <maximumf>, %177, %cst_81 [2] : vector<2x8x8xf32> to vector<2x8xf32>
    %179 = vector.shape_cast %178 : vector<2x8xf32> to vector<2x8x1xf32>
    %180 = vector.broadcast %179 : vector<2x8x1xf32> to vector<2x8x8xf32>
    %181 = arith.subf %177, %180 : vector<2x8x8xf32>
    %182 = math.exp %181 : vector<2x8x8xf32>
    %cst_82 = arith.constant dense<0.000000e+00> : vector<2x8xf32>
    %183 = vector.multi_reduction <add>, %182, %cst_82 [2] : vector<2x8x8xf32> to vector<2x8xf32>
    %184 = vector.shape_cast %183 : vector<2x8xf32> to vector<2x8x1xf32>
    %185 = tpu.reciprocal %184 {approx = true} : vector<2x8x1xf32> -> vector<2x8x1xf32>
    %186 = vector.broadcast %185 : vector<2x8x1xf32> to vector<2x8x8xf32>
    %187 = arith.mulf %182, %186 : vector<2x8x8xf32>
    "tpu.trace_start"() <{level = 10 : i32, message = "bqk,bkd->bqd"}> : () -> ()
    %cst_83 = arith.constant dense<0.000000e+00> : vector<2x8x16xf32>
    %188 = tpu.matmul %187, %174, %cst_83 {dimension_numbers = #tpu.dot_dimension_numbers<[2], [1], [1], [2], [0, 0, 0, 1, 1, 2], [0], [0]>} : vector<2x8x8xf32>, vector<2x8x16xf32>, vector<2x8x16xf32> -> vector<2x8x16xf32>
    "tpu.trace_stop"() : () -> ()
    %189 = vector.shape_cast %188 : vector<2x8x16xf32> to vector<16x16xf32>
    %190 = vector.extract_strided_slice %143 {offsets = [16, 0], sizes = [16, 32], strides = [1, 1]} : vector<32x32xf32> to vector<16x32xf32>
    %cst_84 = arith.constant dense<0.000000e+00> : vector<16x32xf32>
    %191 = tpu.matmul %189, %190, %cst_84 {dimension_numbers = #tpu.dot_dimension_numbers<[1], [0], [0], [1], [0, 0, 1, 1], [], []>} : vector<16x16xf32>, vector<16x32xf32>, vector<16x32xf32> -> vector<16x32xf32>
    %192 = arith.addf %168, %191 : vector<16x32xf32>
    %c1_85 = arith.constant 1 : index
    %c0_86 = arith.constant 0 : index
    %c0_87 = arith.constant 0 : index
    %193 = vector.load %arg5[%c1_85, %c0_86, %c0_87] : memref<2x1x32xf32, #tpu.memory_space<vmem>>, vector<1x1x32xf32>
    %194 = vector.shape_cast %193 : vector<1x1x32xf32> to vector<1x32xf32>
    %195 = vector.broadcast %194 : vector<1x32xf32> to vector<16x32xf32>
    %196 = arith.addf %192, %195 : vector<16x32xf32>
    %197 = arith.addf %134, %196 : vector<16x32xf32>
    %c1_88 = arith.constant 1 : index
    %c0_89 = arith.constant 0 : index
    %c0_90 = arith.constant 0 : index
    %198 = vector.load %arg6[%c1_88, %c0_89, %c0_90] : memref<2x1x32xf32, #tpu.memory_space<vmem>>, vector<1x1x32xf32>
    %199 = vector.shape_cast %198 : vector<1x1x32xf32> to vector<1x32xf32>
    %c1_91 = arith.constant 1 : index
    %c0_92 = arith.constant 0 : index
    %c0_93 = arith.constant 0 : index
    %200 = vector.load %arg7[%c1_91, %c0_92, %c0_93] : memref<2x1x32xf32, #tpu.memory_space<vmem>>, vector<1x1x32xf32>
    %201 = vector.shape_cast %200 : vector<1x1x32xf32> to vector<1x32xf32>
    %cst_94 = arith.constant dense<0.000000e+00> : vector<16xf32>
    %202 = vector.multi_reduction <add>, %197, %cst_94 [1] : vector<16x32xf32> to vector<16xf32>
    %203 = vector.shape_cast %202 : vector<16xf32> to vector<16x1xf32>
    %cst_95 = arith.constant 3.200000e+01 : f32
    %204 = vector.broadcast %cst_95 : f32 to vector<16x1xf32>
    %205 = arith.divf %203, %204 : vector<16x1xf32>
    %206 = vector.broadcast %205 : vector<16x1xf32> to vector<16x32xf32>
    %207 = arith.subf %197, %206 : vector<16x32xf32>
    %208 = arith.mulf %207, %207 : vector<16x32xf32>
    %cst_96 = arith.constant dense<0.000000e+00> : vector<16xf32>
    %209 = vector.multi_reduction <add>, %208, %cst_96 [1] : vector<16x32xf32> to vector<16xf32>
    %210 = vector.shape_cast %209 : vector<16xf32> to vector<16x1xf32>
    %cst_97 = arith.constant 3.200000e+01 : f32
    %211 = vector.broadcast %cst_97 : f32 to vector<16x1xf32>
    %212 = arith.divf %210, %211 : vector<16x1xf32>
    %213 = vector.broadcast %205 : vector<16x1xf32> to vector<16x32xf32>
    %214 = arith.subf %197, %213 : vector<16x32xf32>
    %cst_98 = arith.constant 9.99999974E-6 : f32
    %215 = vector.broadcast %cst_98 : f32 to vector<16x1xf32>
    %216 = arith.addf %212, %215 : vector<16x1xf32>
    %217 = math.rsqrt %216 : vector<16x1xf32>
    %218 = vector.broadcast %217 : vector<16x1xf32> to vector<16x32xf32>
    %219 = arith.mulf %214, %218 : vector<16x32xf32>
    %220 = vector.broadcast %199 : vector<1x32xf32> to vector<16x32xf32>
    %221 = arith.mulf %219, %220 : vector<16x32xf32>
    %222 = vector.broadcast %201 : vector<1x32xf32> to vector<16x32xf32>
    %223 = arith.addf %221, %222 : vector<16x32xf32>
    %c1_99 = arith.constant 1 : index
    %c0_100 = arith.constant 0 : index
    %c0_101 = arith.constant 0 : index
    %224 = vector.load %arg8[%c1_99, %c0_100, %c0_101] : memref<2x32x64xf32, #tpu.memory_space<vmem>>, vector<1x32x64xf32>
    %225 = vector.shape_cast %224 : vector<1x32x64xf32> to vector<32x64xf32>
    %cst_102 = arith.constant dense<0.000000e+00> : vector<16x64xf32>
    %226 = tpu.matmul %223, %225, %cst_102 {dimension_numbers = #tpu.dot_dimension_numbers<[1], [0], [0], [1], [0, 0, 1, 1], [], []>} : vector<16x32xf32>, vector<32x64xf32>, vector<16x64xf32> -> vector<16x64xf32>
    %c1_103 = arith.constant 1 : index
    %c0_104 = arith.constant 0 : index
    %c0_105 = arith.constant 0 : index
    %227 = vector.load %arg9[%c1_103, %c0_104, %c0_105] : memref<2x1x64xf32, #tpu.memory_space<vmem>>, vector<1x1x64xf32>
    %228 = vector.shape_cast %227 : vector<1x1x64xf32> to vector<1x64xf32>
    %229 = vector.broadcast %228 : vector<1x64xf32> to vector<16x64xf32>
    %230 = arith.addf %226, %229 : vector<16x64xf32>
    %cst_106 = arith.constant 0.000000e+00 : f32
    %231 = vector.broadcast %cst_106 : f32 to vector<16x64xf32>
    %232 = arith.maximumf %230, %231 : vector<16x64xf32>
    %c1_107 = arith.constant 1 : index
    %c0_108 = arith.constant 0 : index
    %c0_109 = arith.constant 0 : index
    %233 = vector.load %arg10[%c1_107, %c0_108, %c0_109] : memref<2x64x32xf32, #tpu.memory_space<vmem>>, vector<1x64x32xf32>
    %234 = vector.shape_cast %233 : vector<1x64x32xf32> to vector<64x32xf32>
    %cst_110 = arith.constant dense<0.000000e+00> : vector<16x32xf32>
    %235 = tpu.matmul %232, %234, %cst_110 {dimension_numbers = #tpu.dot_dimension_numbers<[1], [0], [0], [1], [0, 0, 1, 1], [], []>} : vector<16x64xf32>, vector<64x32xf32>, vector<16x32xf32> -> vector<16x32xf32>
    %c1_111 = arith.constant 1 : index
    %c0_112 = arith.constant 0 : index
    %c0_113 = arith.constant 0 : index
    %236 = vector.load %arg11[%c1_111, %c0_112, %c0_113] : memref<2x1x32xf32, #tpu.memory_space<vmem>>, vector<1x1x32xf32>
    %237 = vector.shape_cast %236 : vector<1x1x32xf32> to vector<1x32xf32>
    %238 = vector.broadcast %237 : vector<1x32xf32> to vector<16x32xf32>
    %239 = arith.addf %235, %238 : vector<16x32xf32>
    %240 = arith.addf %223, %239 : vector<16x32xf32>
    %c1_114 = arith.constant 1 : index
    %c0_115 = arith.constant 0 : index
    %c0_116 = arith.constant 0 : index
    %241 = vector.load %arg12[%c1_114, %c0_115, %c0_116] : memref<2x1x32xf32, #tpu.memory_space<vmem>>, vector<1x1x32xf32>
    %242 = vector.shape_cast %241 : vector<1x1x32xf32> to vector<1x32xf32>
    %c1_117 = arith.constant 1 : index
    %c0_118 = arith.constant 0 : index
    %c0_119 = arith.constant 0 : index
    %243 = vector.load %arg13[%c1_117, %c0_118, %c0_119] : memref<2x1x32xf32, #tpu.memory_space<vmem>>, vector<1x1x32xf32>
    %244 = vector.shape_cast %243 : vector<1x1x32xf32> to vector<1x32xf32>
    %cst_120 = arith.constant dense<0.000000e+00> : vector<16xf32>
    %245 = vector.multi_reduction <add>, %240, %cst_120 [1] : vector<16x32xf32> to vector<16xf32>
    %246 = vector.shape_cast %245 : vector<16xf32> to vector<16x1xf32>
    %cst_121 = arith.constant 3.200000e+01 : f32
    %247 = vector.broadcast %cst_121 : f32 to vector<16x1xf32>
    %248 = arith.divf %246, %247 : vector<16x1xf32>
    %249 = vector.broadcast %248 : vector<16x1xf32> to vector<16x32xf32>
    %250 = arith.subf %240, %249 : vector<16x32xf32>
    %251 = arith.mulf %250, %250 : vector<16x32xf32>
    %cst_122 = arith.constant dense<0.000000e+00> : vector<16xf32>
    %252 = vector.multi_reduction <add>, %251, %cst_122 [1] : vector<16x32xf32> to vector<16xf32>
    %253 = vector.shape_cast %252 : vector<16xf32> to vector<16x1xf32>
    %cst_123 = arith.constant 3.200000e+01 : f32
    %254 = vector.broadcast %cst_123 : f32 to vector<16x1xf32>
    %255 = arith.divf %253, %254 : vector<16x1xf32>
    %256 = vector.broadcast %248 : vector<16x1xf32> to vector<16x32xf32>
    %257 = arith.subf %240, %256 : vector<16x32xf32>
    %cst_124 = arith.constant 9.99999974E-6 : f32
    %258 = vector.broadcast %cst_124 : f32 to vector<16x1xf32>
    %259 = arith.addf %255, %258 : vector<16x1xf32>
    %260 = math.rsqrt %259 : vector<16x1xf32>
    %261 = vector.broadcast %260 : vector<16x1xf32> to vector<16x32xf32>
    %262 = arith.mulf %257, %261 : vector<16x32xf32>
    %263 = vector.broadcast %242 : vector<1x32xf32> to vector<16x32xf32>
    %264 = arith.mulf %262, %263 : vector<16x32xf32>
    %265 = vector.broadcast %244 : vector<1x32xf32> to vector<16x32xf32>
    %266 = arith.addf %264, %265 : vector<16x32xf32>
    %267 = vector.shape_cast %266 : vector<16x32xf32> to vector<2x8x32xf32>
    %268 = vector.extract_strided_slice %267 {offsets = [0, 0, 0], sizes = [2, 1, 32], strides = [1, 1, 1]} : vector<2x8x32xf32> to vector<2x1x32xf32>
    %269 = vector.shape_cast %268 : vector<2x1x32xf32> to vector<2x32xf32>
    %c0_125 = arith.constant 0 : index
    %c0_126 = arith.constant 0 : index
    %270 = vector.load %arg14[%c0_125, %c0_126] : memref<32x256xf32, #tpu.memory_space<vmem>>, vector<32x256xf32>
    %cst_127 = arith.constant dense<0.000000e+00> : vector<2x256xf32>
    %271 = tpu.matmul %269, %270, %cst_127 {dimension_numbers = #tpu.dot_dimension_numbers<[1], [0], [0], [1], [0, 0, 1, 1], [], []>} : vector<2x32xf32>, vector<32x256xf32>, vector<2x256xf32> -> vector<2x256xf32>
    %c0_128 = arith.constant 0 : index
    %c0_129 = arith.constant 0 : index
    %272 = vector.load %arg15[%c0_128, %c0_129] : memref<1x256xf32, #tpu.memory_space<vmem>>, vector<1x256xf32>
    %273 = vector.broadcast %272 : vector<1x256xf32> to vector<2x256xf32>
    %274 = arith.addf %271, %273 : vector<2x256xf32>
    %275 = math.tanh %274 : vector<2x256xf32>
    %c0_130 = arith.constant 0 : index
    %c0_131 = arith.constant 0 : index
    %276 = vector.load %arg16[%c0_130, %c0_131] : memref<256x128xf32, #tpu.memory_space<vmem>>, vector<256x128xf32>
    %cst_132 = arith.constant dense<0.000000e+00> : vector<2x128xf32>
    %277 = tpu.matmul %275, %276, %cst_132 {dimension_numbers = #tpu.dot_dimension_numbers<[1], [0], [0], [1], [0, 0, 1, 1], [], []>} : vector<2x256xf32>, vector<256x128xf32>, vector<2x128xf32> -> vector<2x128xf32>
    %c0_133 = arith.constant 0 : index
    %c0_134 = arith.constant 0 : index
    %278 = vector.load %arg17[%c0_133, %c0_134] : memref<1x128xf32, #tpu.memory_space<vmem>>, vector<1x128xf32>
    %279 = vector.broadcast %278 : vector<1x128xf32> to vector<2x128xf32>
    %280 = arith.addf %277, %279 : vector<2x128xf32>
    %c0_135 = arith.constant 0 : index
    %c0_136 = arith.constant 0 : index
    %281 = vector.load %arg18[%c0_135, %c0_136] : memref<2x128xf32, #tpu.memory_space<vmem>>, vector<2x128xf32>
    tpu.vector_store %arg18[%c0_135, %c0_136], %280 {strides = array<i32>} : memref<2x128xf32, #tpu.memory_space<vmem>>, vector<2x128xf32>,
    return
  }
}

</mosaic_0001>

<llo_original>
// kernel: bert_classifier_forward.1
$region0: #{bert_classifier_forward.1}
  #allocation0 [shape = 'u32[]', space=smem, size = 0x4, offset = 0x4, fixed_abs, tag = 'smem constant byte address 0x4 - core index']
  #allocation1 [shape = 'u32[72,128]{1,0:T(1,128)}', space=vmem, size = 0x9000, scoped, tag = 'internal scratch']
  %s0 = inlined_call_operand.vmem [shape: f32[2,8,32], index: 0, kind: input, shape index: {}]
  %s1 = inlined_call_operand.vmem [shape: f32[2,1,8], index: 1, kind: input, shape index: {}]
  %s2 = inlined_call_operand.vmem [shape: f32[2,32,96], index: 2, kind: input, shape index: {}]
  %s3 = inlined_call_operand.vmem [shape: f32[2,1,96], index: 3, kind: input, shape index: {}]
  %s4 = inlined_call_operand.vmem [shape: f32[2,32,32], index: 4, kind: input, shape index: {}]
  %s5 = inlined_call_operand.vmem [shape: f32[2,1,32], index: 5, kind: input, shape index: {}]
  %s6 = inlined_call_operand.vmem [shape: f32[2,1,32], index: 6, kind: input, shape index: {}]
  %s7 = inlined_call_operand.vmem [shape: f32[2,1,32], index: 7, kind: input, shape index: {}]
  %s8 = inlined_call_operand.vmem [shape: f32[2,32,64], index: 8, kind: input, shape index: {}]
  %s9 = inlined_call_operand.vmem [shape: f32[2,1,64], index: 9, kind: input, shape index: {}]
  %s10 = inlined_call_operand.vmem [shape: f32[2,64,32], index: 10, kind: input, shape index: {}]
  %s11 = inlined_call_operand.vmem [shape: f32[2,1,32], index: 11, kind: input, shape index: {}]
  %s12 = inlined_call_operand.vmem [shape: f32[2,1,32], index: 12, kind: input, shape index: {}]
  %s13 = inlined_call_operand.vmem [shape: f32[2,1,32], index: 13, kind: input, shape index: {}]
  %s14 = inlined_call_operand.vmem [shape: f32[32,256], index: 14, kind: input, shape index: {}]
  %s15 = inlined_call_operand.vmem [shape: f32[1,256], index: 15, kind: input, shape index: {}]
  %s16 = inlined_call_operand.vmem [shape: f32[256,128], index: 16, kind: input, shape index: {}]
  %s17 = inlined_call_operand.vmem [shape: f32[1,128], index: 17, kind: input, shape index: {}]
  %s18 = inlined_call_operand.hbm [shape: f32[2,128], index: 18, kind: output, shape index: {}]
  %s19 = sld [smem:[#allocation0]]
  $region82: #{bert_classifier_forward.1} parent=0
    _
  %s21 = ssub.s32 1, %s19
  %s22 = scalar_select 0, %s21, %s19
  $region1: #{bert_classifier_forward.1} parent=0
    #allocation2 [shape = 'u8[1024]{0}', space=vmem, size = 0x400, scoped, tag = 'output window, operand 0, single buffered']
    #allocation3 [shape = 's32[1]{0}', space=sflag, size = 0x4, scoped, tag = 'scoped memory for bert_classifier_forward.1']
    %23 = vsyncpa [#allocation3], 0
    // Predicated region
    $region2: #{bert_classifier_forward.1} parent=1 // pred_check
      _
    $region3: #{bert_classifier_forward.1} parent=1 // pred_check_branch
      %25 = sbr.rel (0) target = $region5
    $region4: #{bert_classifier_forward.1} parent=1 // pred_region
      _
    $region5: #{bert_classifier_forward.1} parent=1 // pred_fallthru
      _
    // Predicated region
    $region6: #{bert_classifier_forward.1} parent=1 // pred_check
      _
    $region7: #{bert_classifier_forward.1} parent=1 // pred_check_branch
      %27 = sbr.rel (0) target = $region9
    $region8: #{bert_classifier_forward.1} parent=1 // pred_region
      _
    $region9: #{bert_classifier_forward.1} parent=1 // pred_fallthru
      _
    // Predicated region
    $region10: #{bert_classifier_forward.1} parent=1 // pred_check
      _
    $region11: #{bert_classifier_forward.1} parent=1 // pred_check_branch
      %29 = sbr.rel (0) target = $region13
    $region12: #{bert_classifier_forward.1} parent=1 // pred_region
      _
    $region13: #{bert_classifier_forward.1} parent=1 // pred_fallthru
      _
    // Predicated region
    $region14: #{bert_classifier_forward.1} parent=1 // pred_check
      _
    $region15: #{bert_classifier_forward.1} parent=1 // pred_check_branch
      %31 = sbr.rel (0) target = $region17
    $region16: #{bert_classifier_forward.1} parent=1 // pred_region
      _
    $region17: #{bert_classifier_forward.1} parent=1 // pred_fallthru
      _
    // Predicated region
    $region18: #{bert_classifier_forward.1} parent=1 // pred_check
      _
    $region19: #{bert_classifier_forward.1} parent=1 // pred_check_branch
      %33 = sbr.rel (0) target = $region21
    $region20: #{bert_classifier_forward.1} parent=1 // pred_region
      _
    $region21: #{bert_classifier_forward.1} parent=1 // pred_fallthru
      _
    // Predicated region
    $region22: #{bert_classifier_forward.1} parent=1 // pred_check
      _
    $region23: #{bert_classifier_forward.1} parent=1 // pred_check_branch
      %35 = sbr.rel (0) target = $region25
    $region24: #{bert_classifier_forward.1} parent=1 // pred_region
      _
    $region25: #{bert_classifier_forward.1} parent=1 // pred_fallthru
      _
    // Predicated region
    $region26: #{bert_classifier_forward.1} parent=1 // pred_check
      _
    $region27: #{bert_classifier_forward.1} parent=1 // pred_check_branch
      %37 = sbr.rel (0) target = $region29
    $region28: #{bert_classifier_forward.1} parent=1 // pred_region
      _
    $region29: #{bert_classifier_forward.1} parent=1 // pred_fallthru
      _
    // Predicated region
    $region30: #{bert_classifier_forward.1} parent=1 // pred_check
      _
    $region31: #{bert_classifier_forward.1} parent=1 // pred_check_branch
      %39 = sbr.rel (0) target = $region33
    $region32: #{bert_classifier_forward.1} parent=1 // pred_region
      _
    $region33: #{bert_classifier_forward.1} parent=1 // pred_fallthru
      _
    // Predicated region
    $region34: #{bert_classifier_forward.1} parent=1 // pred_check
      _
    $region35: #{bert_classifier_forward.1} parent=1 // pred_check_branch
      %41 = sbr.rel (0) target = $region37
    $region36: #{bert_classifier_forward.1} parent=1 // pred_region
      _
    $region37: #{bert_classifier_forward.1} parent=1 // pred_fallthru
      _
    // Predicated region
    $region38: #{bert_classifier_forward.1} parent=1 // pred_check
      _
    $region39: #{bert_classifier_forward.1} parent=1 // pred_check_branch
      %43 = sbr.rel (0) target = $region41
    $region40: #{bert_classifier_forward.1} parent=1 // pred_region
      _
    $region41: #{bert_classifier_forward.1} parent=1 // pred_fallthru
      _
    // Predicated region
    $region42: #{bert_classifier_forward.1} parent=1 // pred_check
      _
    $region43: #{bert_classifier_forward.1} parent=1 // pred_check_branch
      %45 = sbr.rel (0) target = $region45
    $region44: #{bert_classifier_forward.1} parent=1 // pred_region
      _
    $region45: #{bert_classifier_forward.1} parent=1 // pred_fallthru
      _
    // Predicated region
    $region46: #{bert_classifier_forward.1} parent=1 // pred_check
      _
    $region47: #{bert_classifier_forward.1} parent=1 // pred_check_branch
      %47 = sbr.rel (0) target = $region49
    $region48: #{bert_classifier_forward.1} parent=1 // pred_region
      _
    $region49: #{bert_classifier_forward.1} parent=1 // pred_fallthru
      _
    // Predicated region
    $region50: #{bert_classifier_forward.1} parent=1 // pred_check
      _
    $region51: #{bert_classifier_forward.1} parent=1 // pred_check_branch
      %49 = sbr.rel (0) target = $region53
    $region52: #{bert_classifier_forward.1} parent=1 // pred_region
      _
    $region53: #{bert_classifier_forward.1} parent=1 // pred_fallthru
      _
    // Predicated region
    $region54: #{bert_classifier_forward.1} parent=1 // pred_check
      _
    $region55: #{bert_classifier_forward.1} parent=1 // pred_check_branch
      %51 = sbr.rel (0) target = $region57
    $region56: #{bert_classifier_forward.1} parent=1 // pred_region
      _
    $region57: #{bert_classifier_forward.1} parent=1 // pred_fallthru
      _
    // Predicated region
    $region58: #{bert_classifier_forward.1} parent=1 // pred_check
      _
    $region59: #{bert_classifier_forward.1} parent=1 // pred_check_branch
      %53 = sbr.rel (0) target = $region61
    $region60: #{bert_classifier_forward.1} parent=1 // pred_region
      _
    $region61: #{bert_classifier_forward.1} parent=1 // pred_fallthru
      _
    // Predicated region
    $region62: #{bert_classifier_forward.1} parent=1 // pred_check
      _
    $region63: #{bert_classifier_forward.1} parent=1 // pred_check_branch
      %55 = sbr.rel (0) target = $region65
    $region64: #{bert_classifier_forward.1} parent=1 // pred_region
      _
    $region65: #{bert_classifier_forward.1} parent=1 // pred_fallthru
      _
    // Predicated region
    $region66: #{bert_classifier_forward.1} parent=1 // pred_check
      _
    $region67: #{bert_classifier_forward.1} parent=1 // pred_check_branch
      %57 = sbr.rel (0) target = $region69
    $region68: #{bert_classifier_forward.1} parent=1 // pred_region
      _
    $region69: #{bert_classifier_forward.1} parent=1 // pred_fallthru
      _
    // Predicated region
    $region70: #{bert_classifier_forward.1} parent=1 // pred_check
      _
    $region71: #{bert_classifier_forward.1} parent=1 // pred_check_branch
      %59 = sbr.rel (0) target = $region73
    $region72: #{bert_classifier_forward.1} parent=1 // pred_region
      _
    $region73: #{bert_classifier_forward.1} parent=1 // pred_fallthru
      _
    %v60 = vld [vmem:[%s0] sm:$0xff]
    %v61 = vld [vmem:[%s0 + $0x8] sm:$0xff]
    %v62 = vld [vmem:[%s1] sm:$0x1]
    %v63 = vld [vmem:[%s1 + $0x1] sm:$0x1]
    %v64 = vld [vmem:[%s2] sm:$0xff]
    %v65 = vld [vmem:[%s2 + $0x8] sm:$0xff]
    %v66 = vld [vmem:[%s2 + $0x10] sm:$0xff]
    %v67 = vld [vmem:[%s2 + $0x18] sm:$0xff]
    %v68 = vld [vmem:[%s3] sm:$0x1]
    %v70 = vperm.slane %v68, 0
    %vm72 = vcmask 261120
    %v74 = vsel %vm72, %v60, 0
    %v77 = vsel %vm72, %v61, 0
    %79 = vmatpush.msra.mxu0 0.0
    %80 = vmatpush.msra.mxu0 0.0
    %81 = vmatpush.msra.mxu0 0.0
    %82 = vmatpush.msra.mxu0 0.0
    %83 = vmatpush.msra.mxu0 0.0
    %84 = vmatpush.msra.mxu0 0.0
    %85 = vmatpush.msra.mxu0 0.0
    %86 = vmatpush.msra.mxu0 0.0
    %87 = vmatpush.msra.mxu0 0.0
    %88 = vmatpush.msra.mxu0 0.0
    %89 = vmatpush.msra.mxu0 0.0
    %90 = vmatpush.msra.mxu0 0.0
    %91 = vmatpush.msra.mxu0 %v67
    %92 = vmatpush.msra.mxu0 %v66
    %93 = vmatpush.msra.mxu0 %v65
    %94 = vmatpush.msra.mxu0 %v64
    %95 = vmatmul.f32.gmra.mxu0 %v74
    %v96 = vpop.f32.mrf.mxu0
    %v97 = vadd.f32 %v70, %v96
    %98 = vmatmul.f32.gmra.mxu0 %v77
    %v99 = vpop.f32.mrf.mxu0
    %v100 = vadd.f32 %v70, %v99
    %101 = vdwg.mxu0
    %v102 = vld [vmem:[%s4] sm:$0xff]
    %v103 = vld [vmem:[%s4 + $0x8] sm:$0xff]
    %v104 = vld [vmem:[%s4 + $0x10] sm:$0xff]
    %v105 = vld [vmem:[%s4 + $0x18] sm:$0xff]
    %v108 = vperm.slane %v62, 0
    %v109 = vperm.slane %v63, 0
    %113 = vrot.lane.b32.xlu0 %v97, 96
    %v114 = vpop.permute.xlu0 %113
    %vm115 = vcmask 130048
    %v116 = vsel %vm115, %v97, 0
    %v118 = vsel %vm115, %v114, 0
    %120 = vmatpush.xpose.msra.mxu0 0.0
    %121 = vmatpush.xpose.msra.mxu0 0.0
    %122 = vmatpush.xpose.msra.mxu0 0.0
    %123 = vmatpush.xpose.msra.mxu0 0.0
    %124 = vmatpush.xpose.msra.mxu0 0.0
    %125 = vmatpush.xpose.msra.mxu0 0.0
    %126 = vmatpush.xpose.msra.mxu0 0.0
    %127 = vmatpush.xpose.msra.mxu0 0.0
    %128 = vmatpush.xpose.msra.mxu0 0.0
    %129 = vmatpush.xpose.msra.mxu0 0.0
    %130 = vmatpush.xpose.msra.mxu0 0.0
    %131 = vmatpush.xpose.msra.mxu0 0.0
    %132 = vmatpush.xpose.msra.mxu0 0.0
    %133 = vmatpush.xpose.msra.mxu0 0.0
    %134 = vmatpush.xpose.msra.mxu0 0.0
    %135 = vmatpush.xpose.msra.mxu0 %v118
    %136 = vmatmul.f32.gmra.mxu0 %v116
    %v137 = vpop.f32.mrf.mxu0
    %v138 = vadd.f32 %v108, %v137
    %139 = vdwg.mxu0
    %141 = vrot.lane.b32.xlu0 %v100, 96
    %v142 = vpop.permute.xlu0 %141
    %v143 = vsel %vm115, %v100, 0
    %v145 = vsel %vm115, %v142, 0
    %147 = vmatpush.xpose.msra.mxu0 0.0
    %148 = vmatpush.xpose.msra.mxu0 0.0
    %149 = vmatpush.xpose.msra.mxu0 0.0
    %150 = vmatpush.xpose.msra.mxu0 0.0
    %151 = vmatpush.xpose.msra.mxu0 0.0
    %152 = vmatpush.xpose.msra.mxu0 0.0
    %153 = vmatpush.xpose.msra.mxu0 0.0
    %154 = vmatpush.xpose.msra.mxu0 0.0
    %155 = vmatpush.xpose.msra.mxu0 0.0
    %156 = vmatpush.xpose.msra.mxu0 0.0
    %157 = vmatpush.xpose.msra.mxu0 0.0
    %158 = vmatpush.xpose.msra.mxu0 0.0
    %159 = vmatpush.xpose.msra.mxu0 0.0
    %160 = vmatpush.xpose.msra.mxu0 0.0
    %161 = vmatpush.xpose.msra.mxu0 0.0
    %162 = vmatpush.xpose.msra.mxu0 %v145
    %163 = vmatmul.f32.gmra.mxu0 %v143
    %v164 = vpop.f32.mrf.mxu0
    %v165 = vadd.f32 %v109, %v164
    %166 = vdwg.mxu0
    %vm167 = vcmask 64512
    %v168 = vsel %vm167, %v138, -inf
    %169 = vmax.xlane.f32.xlu0 %v168
    %v170 = vpop.xlane.xlu0 %169
    %v171 = vsel %vm167, %v165, -inf
    %172 = vmax.xlane.f32.xlu0 %v171
    %v173 = vpop.xlane.xlu0 %172
    %v174 = vsub.f32 %v138, %v170
    %v175 = vsub.f32 %v165, %v173
    %v176 = vmul.f32 %v174, 1.442695
    %v177 = vpow.pop %v176
    %v178 = vmul.f32 %v175, 1.442695
    %v179 = vpow.pop %v178
    %v180 = vsel %vm167, %v177, 0.0
    %181 = vadd.xlane.f32.xlu0 %v180
    %v182 = vpop.xlane.xlu0 %181
    %v183 = vsel %vm167, %v179, 0.0
    %184 = vadd.xlane.f32.xlu0 %v183
    %v185 = vpop.xlane.xlu0 %184
    %v186 = vrcp.pop %v182
    %v187 = vrcp.pop %v185
    %v188 = vmul.f32 %v177, %v186
    %v189 = vmul.f32 %v179, %v187
    %190 = vrot.lane.b32.xlu0 %v97, 64
    %v191 = vpop.permute.xlu0 %190
    %v194 = vsel %vm167, %v188, 0
    %196 = vmatpush.msra.mxu0 0.0
    %197 = vmatpush.msra.mxu0 0.0
    %198 = vmatpush.msra.mxu0 0.0
    %199 = vmatpush.msra.mxu0 0.0
    %200 = vmatpush.msra.mxu0 0.0
    %201 = vmatpush.msra.mxu0 0.0
    %202 = vmatpush.msra.mxu0 0.0
    %203 = vmatpush.msra.mxu0 0.0
    %204 = vmatpush.msra.mxu0 0.0
    %205 = vmatpush.msra.mxu0 0.0
    %206 = vmatpush.msra.mxu0 0.0
    %207 = vmatpush.msra.mxu0 0.0
    %208 = vmatpush.msra.mxu0 0.0
    %209 = vmatpush.msra.mxu0 0.0
    %210 = vmatpush.msra.mxu0 0.0
    %211 = vmatpush.msra.mxu0 %v191
    %212 = vmatmul.f32.gmra.mxu0 %v194
    %v213 = vpop.f32.mrf.mxu0
    %v214 = vadd.f32 0.0, %v213
    %215 = vdwg.mxu0
    %216 = vrot.lane.b32.xlu0 %v100, 64
    %v217 = vpop.permute.xlu0 %216
    %v220 = vsel %vm167, %v189, 0
    %222 = vmatpush.msra.mxu0 0.0
    %223 = vmatpush.msra.mxu0 0.0
    %224 = vmatpush.msra.mxu0 0.0
    %225 = vmatpush.msra.mxu0 0.0
    %226 = vmatpush.msra.mxu0 0.0
    %227 = vmatpush.msra.mxu0 0.0
    %228 = vmatpush.msra.mxu0 0.0
    %229 = vmatpush.msra.mxu0 0.0
    %230 = vmatpush.msra.mxu0 0.0
    %231 = vmatpush.msra.mxu0 0.0
    %232 = vmatpush.msra.mxu0 0.0
    %233 = vmatpush.msra.mxu0 0.0
    %234 = vmatpush.msra.mxu0 0.0
    %235 = vmatpush.msra.mxu0 0.0
    %236 = vmatpush.msra.mxu0 0.0
    %237 = vmatpush.msra.mxu0 %v217
    %238 = vmatmul.f32.gmra.mxu0 %v220
    %v239 = vpop.f32.mrf.mxu0
    %v240 = vadd.f32 0.0, %v239
    %241 = vdwg.mxu0
    %242 = vrot.lane.b32.xlu0 %v97, 112
    %v243 = vpop.permute.xlu0 %242
    %244 = vrot.lane.b32.xlu0 %v97, 80
    %v245 = vpop.permute.xlu0 %244
    %v246 = vsel %vm115, %v243, 0
    %v248 = vsel %vm115, %v245, 0
    %250 = vmatpush.xpose.msra.mxu0 0.0
    %251 = vmatpush.xpose.msra.mxu0 0.0
    %252 = vmatpush.xpose.msra.mxu0 0.0
    %253 = vmatpush.xpose.msra.mxu0 0.0
    %254 = vmatpush.xpose.msra.mxu0 0.0
    %255 = vmatpush.xpose.msra.mxu0 0.0
    %256 = vmatpush.xpose.msra.mxu0 0.0
    %257 = vmatpush.xpose.msra.mxu0 0.0
    %258 = vmatpush.xpose.msra.mxu0 0.0
    %259 = vmatpush.xpose.msra.mxu0 0.0
    %260 = vmatpush.xpose.msra.mxu0 0.0
    %261 = vmatpush.xpose.msra.mxu0 0.0
    %262 = vmatpush.xpose.msra.mxu0 0.0
    %263 = vmatpush.xpose.msra.mxu0 0.0
    %264 = vmatpush.xpose.msra.mxu0 0.0
    %265 = vmatpush.xpose.msra.mxu0 %v248
    %266 = vmatmul.f32.gmra.mxu0 %v246
    %v267 = vpop.f32.mrf.mxu0
    %v268 = vadd.f32 %v108, %v267
    %269 = vdwg.mxu0
    %270 = vrot.lane.b32.xlu0 %v100, 112
    %v271 = vpop.permute.xlu0 %270
    %272 = vrot.lane.b32.xlu0 %v100, 80
    %v273 = vpop.permute.xlu0 %272
    %v274 = vsel %vm115, %v271, 0
    %v276 = vsel %vm115, %v273, 0
    %278 = vmatpush.xpose.msra.mxu0 0.0
    %279 = vmatpush.xpose.msra.mxu0 0.0
    %280 = vmatpush.xpose.msra.mxu0 0.0
    %281 = vmatpush.xpose.msra.mxu0 0.0
    %282 = vmatpush.xpose.msra.mxu0 0.0
    %283 = vmatpush.xpose.msra.mxu0 0.0
    %284 = vmatpush.xpose.msra.mxu0 0.0
    %285 = vmatpush.xpose.msra.mxu0 0.0
    %286 = vmatpush.xpose.msra.mxu0 0.0
    %287 = vmatpush.xpose.msra.mxu0 0.0
    %288 = vmatpush.xpose.msra.mxu0 0.0
    %289 = vmatpush.xpose.msra.mxu0 0.0
    %290 = vmatpush.xpose.msra.mxu0 0.0
    %291 = vmatpush.xpose.msra.mxu0 0.0
    %292 = vmatpush.xpose.msra.mxu0 0.0
    %293 = vmatpush.xpose.msra.mxu0 %v276
    %294 = vmatmul.f32.gmra.mxu0 %v274
    %v295 = vpop.f32.mrf.mxu0
    %v296 = vadd.f32 %v109, %v295
    %297 = vdwg.mxu0
    %v298 = vsel %vm167, %v268, -inf
    %299 = vmax.xlane.f32.xlu0 %v298
    %v300 = vpop.xlane.xlu0 %299
    %v301 = vsel %vm167, %v296, -inf
    %302 = vmax.xlane.f32.xlu0 %v301
    %v303 = vpop.xlane.xlu0 %302
    %v304 = vsub.f32 %v268, %v300
    %v305 = vsub.f32 %v296, %v303
    %v306 = vmul.f32 %v304, 1.442695
    %v307 = vpow.pop %v306
    %v308 = vmul.f32 %v305, 1.442695
    %v309 = vpow.pop %v308
    %v310 = vsel %vm167, %v307, 0.0
    %311 = vadd.xlane.f32.xlu0 %v310
    %v312 = vpop.xlane.xlu0 %311
    %v313 = vsel %vm167, %v309, 0.0
    %314 = vadd.xlane.f32.xlu0 %v313
    %v315 = vpop.xlane.xlu0 %314
    %v316 = vrcp.pop %v312
    %v317 = vrcp.pop %v315
    %v318 = vmul.f32 %v307, %v316
    %v319 = vmul.f32 %v309, %v317
    %320 = vrot.lane.b32.xlu0 %v97, 48
    %v321 = vpop.permute.xlu0 %320
    %v324 = vsel %vm167, %v318, 0
    %326 = vmatpush.msra.mxu0 0.0
    %327 = vmatpush.msra.mxu0 0.0
    %328 = vmatpush.msra.mxu0 0.0
    %329 = vmatpush.msra.mxu0 0.0
    %330 = vmatpush.msra.mxu0 0.0
    %331 = vmatpush.msra.mxu0 0.0
    %332 = vmatpush.msra.mxu0 0.0
    %333 = vmatpush.msra.mxu0 0.0
    %334 = vmatpush.msra.mxu0 0.0
    %335 = vmatpush.msra.mxu0 0.0
    %336 = vmatpush.msra.mxu0 0.0
    %337 = vmatpush.msra.mxu0 0.0
    %338 = vmatpush.msra.mxu0 0.0
    %339 = vmatpush.msra.mxu0 0.0
    %340 = vmatpush.msra.mxu0 0.0
    %341 = vmatpush.msra.mxu0 %v321
    %342 = vmatmul.f32.gmra.mxu0 %v324
    %v343 = vpop.f32.mrf.mxu0
    %v344 = vadd.f32 0.0, %v343
    %345 = vdwg.mxu0
    %346 = vrot.lane.b32.xlu0 %v100, 48
    %v347 = vpop.permute.xlu0 %346
    %v350 = vsel %vm167, %v319, 0
    %352 = vmatpush.msra.mxu0 0.0
    %353 = vmatpush.msra.mxu0 0.0
    %354 = vmatpush.msra.mxu0 0.0
    %355 = vmatpush.msra.mxu0 0.0
    %356 = vmatpush.msra.mxu0 0.0
    %357 = vmatpush.msra.mxu0 0.0
    %358 = vmatpush.msra.mxu0 0.0
    %359 = vmatpush.msra.mxu0 0.0
    %360 = vmatpush.msra.mxu0 0.0
    %361 = vmatpush.msra.mxu0 0.0
    %362 = vmatpush.msra.mxu0 0.0
    %363 = vmatpush.msra.mxu0 0.0
    %364 = vmatpush.msra.mxu0 0.0
    %365 = vmatpush.msra.mxu0 0.0
    %366 = vmatpush.msra.mxu0 0.0
    %367 = vmatpush.msra.mxu0 %v347
    %368 = vmatmul.f32.gmra.mxu0 %v350
    %v369 = vpop.f32.mrf.mxu0
    %v370 = vadd.f32 0.0, %v369
    %371 = vdwg.mxu0
    %v373 = vsel %vm115, %v344, 0
    %v376 = vsel %vm115, %v370, 0
    %378 = vmatpush.msra.mxu0 0.0
    %379 = vmatpush.msra.mxu0 0.0
    %380 = vmatpush.msra.mxu0 0.0
    %381 = vmatpush.msra.mxu0 0.0
    %382 = vmatpush.msra.mxu0 0.0
    %383 = vmatpush.msra.mxu0 0.0
    %384 = vmatpush.msra.mxu0 0.0
    %385 = vmatpush.msra.mxu0 0.0
    %386 = vmatpush.msra.mxu0 0.0
    %387 = vmatpush.msra.mxu0 0.0
    %388 = vmatpush.msra.mxu0 0.0
    %389 = vmatpush.msra.mxu0 0.0
    %390 = vmatpush.msra.mxu0 0.0
    %391 = vmatpush.msra.mxu0 0.0
    %392 = vmatpush.msra.mxu0 %v105
    %393 = vmatpush.msra.mxu0 %v104
    %394 = vmatmul.f32.gmra.mxu0 %v373
    %v395 = vpop.f32.mrf.mxu0
    %v396 = vadd.f32 0.0, %v395
    %397 = vmatmul.f32.gmra.mxu0 %v376
    %v398 = vpop.f32.mrf.mxu0
    %v399 = vadd.f32 0.0, %v398
    %400 = vdwg.mxu0
    %v402 = vsel %vm115, %v214, 0
    %v405 = vsel %vm115, %v240, 0
    %407 = vmatpush.msra.mxu0 0.0
    %408 = vmatpush.msra.mxu0 0.0
    %409 = vmatpush.msra.mxu0 0.0
    %410 = vmatpush.msra.mxu0 0.0
    %411 = vmatpush.msra.mxu0 0.0
    %412 = vmatpush.msra.mxu0 0.0
    %413 = vmatpush.msra.mxu0 0.0
    %414 = vmatpush.msra.mxu0 0.0
    %415 = vmatpush.msra.mxu0 0.0
    %416 = vmatpush.msra.mxu0 0.0
    %417 = vmatpush.msra.mxu0 0.0
    %418 = vmatpush.msra.mxu0 0.0
    %419 = vmatpush.msra.mxu0 0.0
    %420 = vmatpush.msra.mxu0 0.0
    %421 = vmatpush.msra.mxu0 %v103
    %422 = vmatpush.msra.mxu0 %v102
    %423 = vmatmul.f32.gmra.mxu0 %v402
    %v424 = vpop.f32.mrf.mxu0
    %v425 = vadd.f32 %v396, %v424
    %426 = vmatmul.f32.gmra.mxu0 %v405
    %v427 = vpop.f32.mrf.mxu0
    %v428 = vadd.f32 %v399, %v427
    %429 = vdwg.mxu0
    %v430 = vld [vmem:[%s5] sm:$0x1]
    %v432 = vperm.slane %v430, 0
    %v434 = vadd.f32 %v425, %v432
    %v435 = vadd.f32 %v428, %v432
    %v436 = vadd.f32 %v60, %v434
    %v437 = vadd.f32 %v61, %v435
    %v438 = vld [vmem:[%s6] sm:$0x1]
    %v439 = vld [vmem:[%s7] sm:$0x1]
    %v440 = vsel %vm72, %v436, 0.0
    %441 = vadd.xlane.f32.xlu0 %v440
    %v442 = vpop.xlane.xlu0 %441
    %v443 = vsel %vm72, %v437, 0.0
    %444 = vadd.xlane.f32.xlu0 %v443
    %v445 = vpop.xlane.xlu0 %444
    %v446 = vrcp.pop 32.0
    %v447 = vmul.f32 32.0, %v446
    %v448 = vsub.f32 1.0, %v447
    %v449 = vmul.f32 %v446, %v448
    %v450 = vadd.f32 %v446, %v449
    %vm451 = vweird.f32 %v446
    %v452 = vsel %vm451, %v446, %v450
    %v453 = vmul.f32 %v442, %v452
    %v454 = vmul.f32 %v445, %v452
    %v455 = vsub.f32 %v436, %v453
    %v456 = vsub.f32 %v437, %v454
    %v457 = vmul.f32 %v455, %v455
    %v458 = vmul.f32 %v456, %v456
    %v459 = vsel %vm72, %v457, 0.0
    %460 = vadd.xlane.f32.xlu0 %v459
    %v461 = vpop.xlane.xlu0 %460
    %v462 = vsel %vm72, %v458, 0.0
    %463 = vadd.xlane.f32.xlu0 %v462
    %v464 = vpop.xlane.xlu0 %463
    %v465 = vmul.f32 %v461, %v452
    %v466 = vmul.f32 %v464, %v452
    %v467 = vadd.f32 %v465, 1e-05
    %v468 = vadd.f32 %v466, 1e-05
    %v469 = vrsqrt.pop %v467
    %v470 = vmul.f32 %v469, %v467
    %v471 = vmul.f32 %v470, %v469
    %v472 = vmul.f32 0.5, %v471
    %v473 = vsub.f32 1.5, %v472
    %v474 = vmul.f32 %v469, %v473
    %vm475 = vweird.f32 %v467
    %vm476 = vweird.f32 %v469
    %vm477 = vmor %vm475, %vm476
    %v478 = vsel %vm477, %v469, %v474
    %v479 = vrsqrt.pop %v468
    %v480 = vmul.f32 %v479, %v468
    %v481 = vmul.f32 %v480, %v479
    %v482 = vmul.f32 0.5, %v481
    %v483 = vsub.f32 1.5, %v482
    %v484 = vmul.f32 %v479, %v483
    %vm485 = vweird.f32 %v468
    %vm486 = vweird.f32 %v479
    %vm487 = vmor %vm485, %vm486
    %v488 = vsel %vm487, %v479, %v484
    %v489 = vmul.f32 %v455, %v478
    %v490 = vmul.f32 %v456, %v488
    %v492 = vperm.slane %v438, 0
    %v494 = vmul.f32 %v489, %v492
    %v495 = vmul.f32 %v490, %v492
    %v497 = vperm.slane %v439, 0
    %v499 = vadd.f32 %v494, %v497
    %v500 = vadd.f32 %v495, %v497
    %v501 = vld [vmem:[%s8] sm:$0xff]
    %v502 = vld [vmem:[%s8 + $0x8] sm:$0xff]
    %v503 = vld [vmem:[%s8 + $0x10] sm:$0xff]
    %v504 = vld [vmem:[%s8 + $0x18] sm:$0xff]
    %v505 = vld [vmem:[%s9] sm:$0x1]
    %v507 = vperm.slane %v505, 0
    %v510 = vsel %vm72, %v499, 0
    %v513 = vsel %vm72, %v500, 0
    %515 = vmatpush.msra.mxu0 0.0
    %516 = vmatpush.msra.mxu0 0.0
    %517 = vmatpush.msra.mxu0 0.0
    %518 = vmatpush.msra.mxu0 0.0
    %519 = vmatpush.msra.mxu0 0.0
    %520 = vmatpush.msra.mxu0 0.0
    %521 = vmatpush.msra.mxu0 0.0
    %522 = vmatpush.msra.mxu0 0.0
    %523 = vmatpush.msra.mxu0 0.0
    %524 = vmatpush.msra.mxu0 0.0
    %525 = vmatpush.msra.mxu0 0.0
    %526 = vmatpush.msra.mxu0 0.0
    %527 = vmatpush.msra.mxu0 %v504
    %528 = vmatpush.msra.mxu0 %v503
    %529 = vmatpush.msra.mxu0 %v502
    %530 = vmatpush.msra.mxu0 %v501
    %531 = vmatmul.f32.gmra.mxu0 %v510
    %v532 = vpop.f32.mrf.mxu0
    %v533 = vadd.f32 %v507, %v532
    %534 = vmatmul.f32.gmra.mxu0 %v513
    %v535 = vpop.f32.mrf.mxu0
    %v536 = vadd.f32 %v507, %v535
    %537 = vdwg.mxu0
    %v538 = vmax.f32 %v533, 0.0
    %v539 = vmax.f32 %v536, 0.0
    %v540 = vld [vmem:[%s10] sm:$0xff]
    %v541 = vld [vmem:[%s10 + $0x8] sm:$0xff]
    %v542 = vld [vmem:[%s10 + $0x10] sm:$0xff]
    %v543 = vld [vmem:[%s10 + $0x18] sm:$0xff]
    %v544 = vld [vmem:[%s10 + $0x20] sm:$0xff]
    %v545 = vld [vmem:[%s10 + $0x28] sm:$0xff]
    %v546 = vld [vmem:[%s10 + $0x30] sm:$0xff]
    %v547 = vld [vmem:[%s10 + $0x38] sm:$0xff]
    %v548 = vld [vmem:[%s11] sm:$0x1]
    %v550 = vperm.slane %v548, 0
    %vm552 = vcmask 523264
    %v554 = vsel %vm552, %v538, 0
    %v557 = vsel %vm552, %v539, 0
    %559 = vmatpush.msra.mxu0 0.0
    %560 = vmatpush.msra.mxu0 0.0
    %561 = vmatpush.msra.mxu0 0.0
    %562 = vmatpush.msra.mxu0 0.0
    %563 = vmatpush.msra.mxu0 0.0
    %564 = vmatpush.msra.mxu0 0.0
    %565 = vmatpush.msra.mxu0 0.0
    %566 = vmatpush.msra.mxu0 0.0
    %567 = vmatpush.msra.mxu0 %v547
    %568 = vmatpush.msra.mxu0 %v546
    %569 = vmatpush.msra.mxu0 %v545
    %570 = vmatpush.msra.mxu0 %v544
    %571 = vmatpush.msra.mxu0 %v543
    %572 = vmatpush.msra.mxu0 %v542
    %573 = vmatpush.msra.mxu0 %v541
    %574 = vmatpush.msra.mxu0 %v540
    %575 = vmatmul.f32.gmra.mxu0 %v554
    %v576 = vpop.f32.mrf.mxu0
    %v577 = vadd.f32 %v550, %v576
    %578 = vmatmul.f32.gmra.mxu0 %v557
    %v579 = vpop.f32.mrf.mxu0
    %v580 = vadd.f32 %v550, %v579
    %581 = vdwg.mxu0
    %v582 = vadd.f32 %v499, %v577
    %v583 = vadd.f32 %v500, %v580
    %v584 = vld [vmem:[%s12] sm:$0x1]
    %v585 = vld [vmem:[%s13] sm:$0x1]
    %v586 = vsel %vm72, %v582, 0.0
    %587 = vadd.xlane.f32.xlu0 %v586
    %v588 = vpop.xlane.xlu0 %587
    %v589 = vsel %vm72, %v583, 0.0
    %590 = vadd.xlane.f32.xlu0 %v589
    %v591 = vpop.xlane.xlu0 %590
    %v592 = vmul.f32 %v588, %v452
    %v593 = vmul.f32 %v591, %v452
    %v594 = vsub.f32 %v582, %v592
    %v595 = vsub.f32 %v583, %v593
    %v596 = vmul.f32 %v594, %v594
    %v597 = vmul.f32 %v595, %v595
    %v598 = vsel %vm72, %v596, 0.0
    %599 = vadd.xlane.f32.xlu0 %v598
    %v600 = vpop.xlane.xlu0 %599
    %v601 = vsel %vm72, %v597, 0.0
    %602 = vadd.xlane.f32.xlu0 %v601
    %v603 = vpop.xlane.xlu0 %602
    %v604 = vmul.f32 %v600, %v452
    %v605 = vmul.f32 %v603, %v452
    %v606 = vadd.f32 %v604, 1e-05
    %v607 = vadd.f32 %v605, 1e-05
    %v608 = vrsqrt.pop %v606
    %v609 = vmul.f32 %v608, %v606
    %v610 = vmul.f32 %v609, %v608
    %v611 = vmul.f32 0.5, %v610
    %v612 = vsub.f32 1.5, %v611
    %v613 = vmul.f32 %v608, %v612
    %vm614 = vweird.f32 %v606
    %vm615 = vweird.f32 %v608
    %vm616 = vmor %vm614, %vm615
    %v617 = vsel %vm616, %v608, %v613
    %v618 = vrsqrt.pop %v607
    %v619 = vmul.f32 %v618, %v607
    %v620 = vmul.f32 %v619, %v618
    %v621 = vmul.f32 0.5, %v620
    %v622 = vsub.f32 1.5, %v621
    %v623 = vmul.f32 %v618, %v622
    %vm624 = vweird.f32 %v607
    %vm625 = vweird.f32 %v618
    %vm626 = vmor %vm624, %vm625
    %v627 = vsel %vm626, %v618, %v623
    %v628 = vmul.f32 %v594, %v617
    %v629 = vmul.f32 %v595, %v627
    %v631 = vperm.slane %v584, 0
    %v633 = vmul.f32 %v628, %v631
    %v634 = vmul.f32 %v629, %v631
    %v636 = vperm.slane %v585, 0
    %v638 = vadd.f32 %v633, %v636
    %v639 = vadd.f32 %v634, %v636
    %s640 = scalar_lea.vmem %s2, 32
    %v641 = vld [vmem:[%s640] sm:$0xff]
    %v642 = vld [vmem:[%s640 + $0x8] sm:$0xff]
    %v643 = vld [vmem:[%s640 + $0x10] sm:$0xff]
    %v644 = vld [vmem:[%s640 + $0x18] sm:$0xff]
    %s645 = scalar_lea.vmem %s3, 1
    %v646 = vld [vmem:[%s645] sm:$0x1]
    %v648 = vperm.slane %v646, 0
    %v651 = vsel %vm72, %v638, 0
    %v654 = vsel %vm72, %v639, 0
    %656 = vmatpush.msra.mxu0 0.0
    %657 = vmatpush.msra.mxu0 0.0
    %658 = vmatpush.msra.mxu0 0.0
    %659 = vmatpush.msra.mxu0 0.0
    %660 = vmatpush.msra.mxu0 0.0
    %661 = vmatpush.msra.mxu0 0.0
    %662 = vmatpush.msra.mxu0 0.0
    %663 = vmatpush.msra.mxu0 0.0
    %664 = vmatpush.msra.mxu0 0.0
    %665 = vmatpush.msra.mxu0 0.0
    %666 = vmatpush.msra.mxu0 0.0
    %667 = vmatpush.msra.mxu0 0.0
    %668 = vmatpush.msra.mxu0 %v644
    %669 = vmatpush.msra.mxu0 %v643
    %670 = vmatpush.msra.mxu0 %v642
    %671 = vmatpush.msra.mxu0 %v641
    %672 = vmatmul.f32.gmra.mxu0 %v651
    %v673 = vpop.f32.mrf.mxu0
    %v674 = vadd.f32 %v648, %v673
    %675 = vmatmul.f32.gmra.mxu0 %v654
    %v676 = vpop.f32.mrf.mxu0
    %v677 = vadd.f32 %v648, %v676
    %678 = vdwg.mxu0
    %s679 = scalar_lea.vmem %s4, 32
    %v680 = vld [vmem:[%s679] sm:$0xff]
    %v681 = vld [vmem:[%s679 + $0x8] sm:$0xff]
    %v682 = vld [vmem:[%s679 + $0x10] sm:$0xff]
    %v683 = vld [vmem:[%s679 + $0x18] sm:$0xff]
    %685 = vrot.lane.b32.xlu0 %v674, 96
    %v686 = vpop.permute.xlu0 %685
    %v687 = vsel %vm115, %v674, 0
    %v689 = vsel %vm115, %v686, 0
    %691 = vmatpush.xpose.msra.mxu0 0.0
    %692 = vmatpush.xpose.msra.mxu0 0.0
    %693 = vmatpush.xpose.msra.mxu0 0.0
    %694 = vmatpush.xpose.msra.mxu0 0.0
    %695 = vmatpush.xpose.msra.mxu0 0.0
    %696 = vmatpush.xpose.msra.mxu0 0.0
    %697 = vmatpush.xpose.msra.mxu0 0.0
    %698 = vmatpush.xpose.msra.mxu0 0.0
    %699 = vmatpush.xpose.msra.mxu0 0.0
    %700 = vmatpush.xpose.msra.mxu0 0.0
    %701 = vmatpush.xpose.msra.mxu0 0.0
    %702 = vmatpush.xpose.msra.mxu0 0.0
    %703 = vmatpush.xpose.msra.mxu0 0.0
    %704 = vmatpush.xpose.msra.mxu0 0.0
    %705 = vmatpush.xpose.msra.mxu0 0.0
    %706 = vmatpush.xpose.msra.mxu0 %v689
    %707 = vmatmul.f32.gmra.mxu0 %v687
    %v708 = vpop.f32.mrf.mxu0
    %v709 = vadd.f32 %v108, %v708
    %710 = vdwg.mxu0
    %712 = vrot.lane.b32.xlu0 %v677, 96
    %v713 = vpop.permute.xlu0 %712
    %v714 = vsel %vm115, %v677, 0
    %v716 = vsel %vm115, %v713, 0
    %718 = vmatpush.xpose.msra.mxu0 0.0
    %719 = vmatpush.xpose.msra.mxu0 0.0
    %720 = vmatpush.xpose.msra.mxu0 0.0
    %721 = vmatpush.xpose.msra.mxu0 0.0
    %722 = vmatpush.xpose.msra.mxu0 0.0
    %723 = vmatpush.xpose.msra.mxu0 0.0
    %724 = vmatpush.xpose.msra.mxu0 0.0
    %725 = vmatpush.xpose.msra.mxu0 0.0
    %726 = vmatpush.xpose.msra.mxu0 0.0
    %727 = vmatpush.xpose.msra.mxu0 0.0
    %728 = vmatpush.xpose.msra.mxu0 0.0
    %729 = vmatpush.xpose.msra.mxu0 0.0
    %730 = vmatpush.xpose.msra.mxu0 0.0
    %731 = vmatpush.xpose.msra.mxu0 0.0
    %732 = vmatpush.xpose.msra.mxu0 0.0
    %733 = vmatpush.xpose.msra.mxu0 %v716
    %734 = vmatmul.f32.gmra.mxu0 %v714
    %v735 = vpop.f32.mrf.mxu0
    %v736 = vadd.f32 %v109, %v735
    %737 = vdwg.mxu0
    %v738 = vsel %vm167, %v709, -inf
    %739 = vmax.xlane.f32.xlu0 %v738
    %v740 = vpop.xlane.xlu0 %739
    %v741 = vsel %vm167, %v736, -inf
    %742 = vmax.xlane.f32.xlu0 %v741
    %v743 = vpop.xlane.xlu0 %742
    %v744 = vsub.f32 %v709, %v740
    %v745 = vsub.f32 %v736, %v743
    %v746 = vmul.f32 %v744, 1.442695
    %v747 = vpow.pop %v746
    %v748 = vmul.f32 %v745, 1.442695
    %v749 = vpow.pop %v748
    %v750 = vsel %vm167, %v747, 0.0
    %751 = vadd.xlane.f32.xlu0 %v750
    %v752 = vpop.xlane.xlu0 %751
    %v753 = vsel %vm167, %v749, 0.0
    %754 = vadd.xlane.f32.xlu0 %v753
    %v755 = vpop.xlane.xlu0 %754
    %v756 = vrcp.pop %v752
    %v757 = vrcp.pop %v755
    %v758 = vmul.f32 %v747, %v756
    %v759 = vmul.f32 %v749, %v757
    %760 = vrot.lane.b32.xlu0 %v674, 64
    %v761 = vpop.permute.xlu0 %760
    %v764 = vsel %vm167, %v758, 0
    %766 = vmatpush.msra.mxu0 0.0
    %767 = vmatpush.msra.mxu0 0.0
    %768 = vmatpush.msra.mxu0 0.0
    %769 = vmatpush.msra.mxu0 0.0
    %770 = vmatpush.msra.mxu0 0.0
    %771 = vmatpush.msra.mxu0 0.0
    %772 = vmatpush.msra.mxu0 0.0
    %773 = vmatpush.msra.mxu0 0.0
    %774 = vmatpush.msra.mxu0 0.0
    %775 = vmatpush.msra.mxu0 0.0
    %776 = vmatpush.msra.mxu0 0.0
    %777 = vmatpush.msra.mxu0 0.0
    %778 = vmatpush.msra.mxu0 0.0
    %779 = vmatpush.msra.mxu0 0.0
    %780 = vmatpush.msra.mxu0 0.0
    %781 = vmatpush.msra.mxu0 %v761
    %782 = vmatmul.f32.gmra.mxu0 %v764
    %v783 = vpop.f32.mrf.mxu0
    %v784 = vadd.f32 0.0, %v783
    %785 = vdwg.mxu0
    %786 = vrot.lane.b32.xlu0 %v677, 64
    %v787 = vpop.permute.xlu0 %786
    %v790 = vsel %vm167, %v759, 0
    %792 = vmatpush.msra.mxu0 0.0
    %793 = vmatpush.msra.mxu0 0.0
    %794 = vmatpush.msra.mxu0 0.0
    %795 = vmatpush.msra.mxu0 0.0
    %796 = vmatpush.msra.mxu0 0.0
    %797 = vmatpush.msra.mxu0 0.0
    %798 = vmatpush.msra.mxu0 0.0
    %799 = vmatpush.msra.mxu0 0.0
    %800 = vmatpush.msra.mxu0 0.0
    %801 = vmatpush.msra.mxu0 0.0
    %802 = vmatpush.msra.mxu0 0.0
    %803 = vmatpush.msra.mxu0 0.0
    %804 = vmatpush.msra.mxu0 0.0
    %805 = vmatpush.msra.mxu0 0.0
    %806 = vmatpush.msra.mxu0 0.0
    %807 = vmatpush.msra.mxu0 %v787
    %808 = vmatmul.f32.gmra.mxu0 %v790
    %v809 = vpop.f32.mrf.mxu0
    %v810 = vadd.f32 0.0, %v809
    %811 = vdwg.mxu0
    %812 = vrot.lane.b32.xlu0 %v674, 112
    %v813 = vpop.permute.xlu0 %812
    %814 = vrot.lane.b32.xlu0 %v674, 80
    %v815 = vpop.permute.xlu0 %814
    %v816 = vsel %vm115, %v813, 0
    %v818 = vsel %vm115, %v815, 0
    %820 = vmatpush.xpose.msra.mxu0 0.0
    %821 = vmatpush.xpose.msra.mxu0 0.0
    %822 = vmatpush.xpose.msra.mxu0 0.0
    %823 = vmatpush.xpose.msra.mxu0 0.0
    %824 = vmatpush.xpose.msra.mxu0 0.0
    %825 = vmatpush.xpose.msra.mxu0 0.0
    %826 = vmatpush.xpose.msra.mxu0 0.0
    %827 = vmatpush.xpose.msra.mxu0 0.0
    %828 = vmatpush.xpose.msra.mxu0 0.0
    %829 = vmatpush.xpose.msra.mxu0 0.0
    %830 = vmatpush.xpose.msra.mxu0 0.0
    %831 = vmatpush.xpose.msra.mxu0 0.0
    %832 = vmatpush.xpose.msra.mxu0 0.0
    %833 = vmatpush.xpose.msra.mxu0 0.0
    %834 = vmatpush.xpose.msra.mxu0 0.0
    %835 = vmatpush.xpose.msra.mxu0 %v818
    %836 = vmatmul.f32.gmra.mxu0 %v816
    %v837 = vpop.f32.mrf.mxu0
    %v838 = vadd.f32 %v108, %v837
    %839 = vdwg.mxu0
    %840 = vrot.lane.b32.xlu0 %v677, 112
    %v841 = vpop.permute.xlu0 %840
    %842 = vrot.lane.b32.xlu0 %v677, 80
    %v843 = vpop.permute.xlu0 %842
    %v844 = vsel %vm115, %v841, 0
    %v846 = vsel %vm115, %v843, 0
    %848 = vmatpush.xpose.msra.mxu0 0.0
    %849 = vmatpush.xpose.msra.mxu0 0.0
    %850 = vmatpush.xpose.msra.mxu0 0.0
    %851 = vmatpush.xpose.msra.mxu0 0.0
    %852 = vmatpush.xpose.msra.mxu0 0.0
    %853 = vmatpush.xpose.msra.mxu0 0.0
    %854 = vmatpush.xpose.msra.mxu0 0.0
    %855 = vmatpush.xpose.msra.mxu0 0.0
    %856 = vmatpush.xpose.msra.mxu0 0.0
    %857 = vmatpush.xpose.msra.mxu0 0.0
    %858 = vmatpush.xpose.msra.mxu0 0.0
    %859 = vmatpush.xpose.msra.mxu0 0.0
    %860 = vmatpush.xpose.msra.mxu0 0.0
    %861 = vmatpush.xpose.msra.mxu0 0.0
    %862 = vmatpush.xpose.msra.mxu0 0.0
    %863 = vmatpush.xpose.msra.mxu0 %v846
    %864 = vmatmul.f32.gmra.mxu0 %v844
    %v865 = vpop.f32.mrf.mxu0
    %v866 = vadd.f32 %v109, %v865
    %867 = vdwg.mxu0
    %v868 = vsel %vm167, %v838, -inf
    %869 = vmax.xlane.f32.xlu0 %v868
    %v870 = vpop.xlane.xlu0 %869
    %v871 = vsel %vm167, %v866, -inf
    %872 = vmax.xlane.f32.xlu0 %v871
    %v873 = vpop.xlane.xlu0 %872
    %v874 = vsub.f32 %v838, %v870
    %v875 = vsub.f32 %v866, %v873
    %v876 = vmul.f32 %v874, 1.442695
    %v877 = vpow.pop %v876
    %v878 = vmul.f32 %v875, 1.442695
    %v879 = vpow.pop %v878
    %v880 = vsel %vm167, %v877, 0.0
    %881 = vadd.xlane.f32.xlu0 %v880
    %v882 = vpop.xlane.xlu0 %881
    %v883 = vsel %vm167, %v879, 0.0
    %884 = vadd.xlane.f32.xlu0 %v883
    %v885 = vpop.xlane.xlu0 %884
    %v886 = vrcp.pop %v882
    %v887 = vrcp.pop %v885
    %v888 = vmul.f32 %v877, %v886
    %v889 = vmul.f32 %v879, %v887
    %890 = vrot.lane.b32.xlu0 %v674, 48
    %v891 = vpop.permute.xlu0 %890
    %v894 = vsel %vm167, %v888, 0
    %896 = vmatpush.msra.mxu0 0.0
    %897 = vmatpush.msra.mxu0 0.0
    %898 = vmatpush.msra.mxu0 0.0
    %899 = vmatpush.msra.mxu0 0.0
    %900 = vmatpush.msra.mxu0 0.0
    %901 = vmatpush.msra.mxu0 0.0
    %902 = vmatpush.msra.mxu0 0.0
    %903 = vmatpush.msra.mxu0 0.0
    %904 = vmatpush.msra.mxu0 0.0
    %905 = vmatpush.msra.mxu0 0.0
    %906 = vmatpush.msra.mxu0 0.0
    %907 = vmatpush.msra.mxu0 0.0
    %908 = vmatpush.msra.mxu0 0.0
    %909 = vmatpush.msra.mxu0 0.0
    %910 = vmatpush.msra.mxu0 0.0
    %911 = vmatpush.msra.mxu0 %v891
    %912 = vmatmul.f32.gmra.mxu0 %v894
    %v913 = vpop.f32.mrf.mxu0
    %v914 = vadd.f32 0.0, %v913
    %915 = vdwg.mxu0
    %916 = vrot.lane.b32.xlu0 %v677, 48
    %v917 = vpop.permute.xlu0 %916
    %v920 = vsel %vm167, %v889, 0
    %922 = vmatpush.msra.mxu0 0.0
    %923 = vmatpush.msra.mxu0 0.0
    %924 = vmatpush.msra.mxu0 0.0
    %925 = vmatpush.msra.mxu0 0.0
    %926 = vmatpush.msra.mxu0 0.0
    %927 = vmatpush.msra.mxu0 0.0
    %928 = vmatpush.msra.mxu0 0.0
    %929 = vmatpush.msra.mxu0 0.0
    %930 = vmatpush.msra.mxu0 0.0
    %931 = vmatpush.msra.mxu0 0.0
    %932 = vmatpush.msra.mxu0 0.0
    %933 = vmatpush.msra.mxu0 0.0
    %934 = vmatpush.msra.mxu0 0.0
    %935 = vmatpush.msra.mxu0 0.0
    %936 = vmatpush.msra.mxu0 0.0
    %937 = vmatpush.msra.mxu0 %v917
    %938 = vmatmul.f32.gmra.mxu0 %v920
    %v939 = vpop.f32.mrf.mxu0
    %v940 = vadd.f32 0.0, %v939
    %941 = vdwg.mxu0
    %v943 = vsel %vm115, %v914, 0
    %v946 = vsel %vm115, %v940, 0
    %948 = vmatpush.msra.mxu0 0.0
    %949 = vmatpush.msra.mxu0 0.0
    %950 = vmatpush.msra.mxu0 0.0
    %951 = vmatpush.msra.mxu0 0.0
    %952 = vmatpush.msra.mxu0 0.0
    %953 = vmatpush.msra.mxu0 0.0
    %954 = vmatpush.msra.mxu0 0.0
    %955 = vmatpush.msra.mxu0 0.0
    %956 = vmatpush.msra.mxu0 0.0
    %957 = vmatpush.msra.mxu0 0.0
    %958 = vmatpush.msra.mxu0 0.0
    %959 = vmatpush.msra.mxu0 0.0
    %960 = vmatpush.msra.mxu0 0.0
    %961 = vmatpush.msra.mxu0 0.0
    %962 = vmatpush.msra.mxu0 %v683
    %963 = vmatpush.msra.mxu0 %v682
    %964 = vmatmul.f32.gmra.mxu0 %v943
    %v965 = vpop.f32.mrf.mxu0
    %v966 = vadd.f32 0.0, %v965
    %967 = vmatmul.f32.gmra.mxu0 %v946
    %v968 = vpop.f32.mrf.mxu0
    %v969 = vadd.f32 0.0, %v968
    %970 = vdwg.mxu0
    %v972 = vsel %vm115, %v784, 0
    %v975 = vsel %vm115, %v810, 0
    %977 = vmatpush.msra.mxu0 0.0
    %978 = vmatpush.msra.mxu0 0.0
    %979 = vmatpush.msra.mxu0 0.0
    %980 = vmatpush.msra.mxu0 0.0
    %981 = vmatpush.msra.mxu0 0.0
    %982 = vmatpush.msra.mxu0 0.0
    %983 = vmatpush.msra.mxu0 0.0
    %984 = vmatpush.msra.mxu0 0.0
    %985 = vmatpush.msra.mxu0 0.0
    %986 = vmatpush.msra.mxu0 0.0
    %987 = vmatpush.msra.mxu0 0.0
    %988 = vmatpush.msra.mxu0 0.0
    %989 = vmatpush.msra.mxu0 0.0
    %990 = vmatpush.msra.mxu0 0.0
    %991 = vmatpush.msra.mxu0 %v681
    %992 = vmatpush.msra.mxu0 %v680
    %993 = vmatmul.f32.gmra.mxu0 %v972
    %v994 = vpop.f32.mrf.mxu0
    %v995 = vadd.f32 %v966, %v994
    %996 = vmatmul.f32.gmra.mxu0 %v975
    %v997 = vpop.f32.mrf.mxu0
    %v998 = vadd.f32 %v969, %v997
    %999 = vdwg.mxu0
    %s1000 = scalar_lea.vmem %s5, 1
    %v1001 = vld [vmem:[%s1000] sm:$0x1]
    %v1003 = vperm.slane %v1001, 0
    %v1005 = vadd.f32 %v995, %v1003
    %v1006 = vadd.f32 %v998, %v1003
    %v1007 = vadd.f32 %v638, %v1005
    %v1008 = vadd.f32 %v639, %v1006
    %s1009 = scalar_lea.vmem %s6, 1
    %v1010 = vld [vmem:[%s1009] sm:$0x1]
    %s1011 = scalar_lea.vmem %s7, 1
    %v1012 = vld [vmem:[%s1011] sm:$0x1]
    %v1013 = vsel %vm72, %v1007, 0.0
    %1014 = vadd.xlane.f32.xlu0 %v1013
    %v1015 = vpop.xlane.xlu0 %1014
    %v1016 = vsel %vm72, %v1008, 0.0
    %1017 = vadd.xlane.f32.xlu0 %v1016
    %v1018 = vpop.xlane.xlu0 %1017
    %v1019 = vmul.f32 %v1015, %v452
    %v1020 = vmul.f32 %v1018, %v452
    %v1021 = vsub.f32 %v1007, %v1019
    %v1022 = vsub.f32 %v1008, %v1020
    %v1023 = vmul.f32 %v1021, %v1021
    %v1024 = vmul.f32 %v1022, %v1022
    %v1025 = vsel %vm72, %v1023, 0.0
    %1026 = vadd.xlane.f32.xlu0 %v1025
    %v1027 = vpop.xlane.xlu0 %1026
    %v1028 = vsel %vm72, %v1024, 0.0
    %1029 = vadd.xlane.f32.xlu0 %v1028
    %v1030 = vpop.xlane.xlu0 %1029
    %v1031 = vmul.f32 %v1027, %v452
    %v1032 = vmul.f32 %v1030, %v452
    %v1033 = vadd.f32 %v1031, 1e-05
    %v1034 = vadd.f32 %v1032, 1e-05
    %v1035 = vrsqrt.pop %v1033
    %v1036 = vmul.f32 %v1035, %v1033
    %v1037 = vmul.f32 %v1036, %v1035
    %v1038 = vmul.f32 0.5, %v1037
    %v1039 = vsub.f32 1.5, %v1038
    %v1040 = vmul.f32 %v1035, %v1039
    %vm1041 = vweird.f32 %v1033
    %vm1042 = vweird.f32 %v1035
    %vm1043 = vmor %vm1041, %vm1042
    %v1044 = vsel %vm1043, %v1035, %v1040
    %v1045 = vrsqrt.pop %v1034
    %v1046 = vmul.f32 %v1045, %v1034
    %v1047 = vmul.f32 %v1046, %v1045
    %v1048 = vmul.f32 0.5, %v1047
    %v1049 = vsub.f32 1.5, %v1048
    %v1050 = vmul.f32 %v1045, %v1049
    %vm1051 = vweird.f32 %v1034
    %vm1052 = vweird.f32 %v1045
    %vm1053 = vmor %vm1051, %vm1052
    %v1054 = vsel %vm1053, %v1045, %v1050
    %v1055 = vmul.f32 %v1021, %v1044
    %v1056 = vmul.f32 %v1022, %v1054
    %v1058 = vperm.slane %v1010, 0
    %v1060 = vmul.f32 %v1055, %v1058
    %v1061 = vmul.f32 %v1056, %v1058
    %v1063 = vperm.slane %v1012, 0
    %v1065 = vadd.f32 %v1060, %v1063
    %v1066 = vadd.f32 %v1061, %v1063
    %s1067 = scalar_lea.vmem %s8, 32
    %v1068 = vld [vmem:[%s1067] sm:$0xff]
    %v1069 = vld [vmem:[%s1067 + $0x8] sm:$0xff]
    %v1070 = vld [vmem:[%s1067 + $0x10] sm:$0xff]
    %v1071 = vld [vmem:[%s1067 + $0x18] sm:$0xff]
    %s1072 = scalar_lea.vmem %s9, 1
    %v1073 = vld [vmem:[%s1072] sm:$0x1]
    %v1075 = vperm.slane %v1073, 0
    %v1078 = vsel %vm72, %v1065, 0
    %v1081 = vsel %vm72, %v1066, 0
    %1083 = vmatpush.msra.mxu0 0.0
    %1084 = vmatpush.msra.mxu0 0.0
    %1085 = vmatpush.msra.mxu0 0.0
    %1086 = vmatpush.msra.mxu0 0.0
    %1087 = vmatpush.msra.mxu0 0.0
    %1088 = vmatpush.msra.mxu0 0.0
    %1089 = vmatpush.msra.mxu0 0.0
    %1090 = vmatpush.msra.mxu0 0.0
    %1091 = vmatpush.msra.mxu0 0.0
    %1092 = vmatpush.msra.mxu0 0.0
    %1093 = vmatpush.msra.mxu0 0.0
    %1094 = vmatpush.msra.mxu0 0.0
    %1095 = vmatpush.msra.mxu0 %v1071
    %1096 = vmatpush.msra.mxu0 %v1070
    %1097 = vmatpush.msra.mxu0 %v1069
    %1098 = vmatpush.msra.mxu0 %v1068
    %1099 = vmatmul.f32.gmra.mxu0 %v1078
    %v1100 = vpop.f32.mrf.mxu0
    %v1101 = vadd.f32 %v1075, %v1100
    %1102 = vmatmul.f32.gmra.mxu0 %v1081
    %v1103 = vpop.f32.mrf.mxu0
    %v1104 = vadd.f32 %v1075, %v1103
    %1105 = vdwg.mxu0
    %v1106 = vmax.f32 %v1101, 0.0
    %v1107 = vmax.f32 %v1104, 0.0
    %s1108 = scalar_lea.vmem %s10, 64
    %v1109 = vld [vmem:[%s1108] sm:$0xff]
    %v1110 = vld [vmem:[%s1108 + $0x8] sm:$0xff]
    %v1111 = vld [vmem:[%s1108 + $0x10] sm:$0xff]
    %v1112 = vld [vmem:[%s1108 + $0x18] sm:$0xff]
    %v1113 = vld [vmem:[%s1108 + $0x20] sm:$0xff]
    %v1114 = vld [vmem:[%s1108 + $0x28] sm:$0xff]
    %v1115 = vld [vmem:[%s1108 + $0x30] sm:$0xff]
    %v1116 = vld [vmem:[%s1108 + $0x38] sm:$0xff]
    %s1117 = scalar_lea.vmem %s11, 1
    %v1118 = vld [vmem:[%s1117] sm:$0x1]
    %v1120 = vperm.slane %v1118, 0
    %v1123 = vsel %vm552, %v1106, 0
    %v1126 = vsel %vm552, %v1107, 0
    %1128 = vmatpush.msra.mxu0 0.0
    %1129 = vmatpush.msra.mxu0 0.0
    %1130 = vmatpush.msra.mxu0 0.0
    %1131 = vmatpush.msra.mxu0 0.0
    %1132 = vmatpush.msra.mxu0 0.0
    %1133 = vmatpush.msra.mxu0 0.0
    %1134 = vmatpush.msra.mxu0 0.0
    %1135 = vmatpush.msra.mxu0 0.0
    %1136 = vmatpush.msra.mxu0 %v1116
    %1137 = vmatpush.msra.mxu0 %v1115
    %1138 = vmatpush.msra.mxu0 %v1114
    %1139 = vmatpush.msra.mxu0 %v1113
    %1140 = vmatpush.msra.mxu0 %v1112
    %1141 = vmatpush.msra.mxu0 %v1111
    %1142 = vmatpush.msra.mxu0 %v1110
    %1143 = vmatpush.msra.mxu0 %v1109
    %1144 = vmatmul.f32.gmra.mxu0 %v1123
    %v1145 = vpop.f32.mrf.mxu0
    %v1146 = vadd.f32 %v1120, %v1145
    %1147 = vmatmul.f32.gmra.mxu0 %v1126
    %v1148 = vpop.f32.mrf.mxu0
    %v1149 = vadd.f32 %v1120, %v1148
    %1150 = vdwg.mxu0
    %v1151 = vadd.f32 %v1065, %v1146
    %v1152 = vadd.f32 %v1066, %v1149
    %s1153 = scalar_lea.vmem %s12, 1
    %v1154 = vld [vmem:[%s1153] sm:$0x1]
    %s1155 = scalar_lea.vmem %s13, 1
    %v1156 = vld [vmem:[%s1155] sm:$0x1]
    %v1157 = vsel %vm72, %v1151, 0.0
    %1158 = vadd.xlane.f32.xlu0 %v1157
    %v1159 = vpop.xlane.xlu0 %1158
    %v1160 = vsel %vm72, %v1152, 0.0
    %1161 = vadd.xlane.f32.xlu0 %v1160
    %v1162 = vpop.xlane.xlu0 %1161
    %v1163 = vmul.f32 %v1159, %v452
    %v1164 = vmul.f32 %v1162, %v452
    %v1165 = vsub.f32 %v1151, %v1163
    %v1166 = vsub.f32 %v1152, %v1164
    %v1167 = vmul.f32 %v1165, %v1165
    %v1168 = vmul.f32 %v1166, %v1166
    %v1169 = vsel %vm72, %v1167, 0.0
    %1170 = vadd.xlane.f32.xlu0 %v1169
    %v1171 = vpop.xlane.xlu0 %1170
    %v1172 = vsel %vm72, %v1168, 0.0
    %1173 = vadd.xlane.f32.xlu0 %v1172
    %v1174 = vpop.xlane.xlu0 %1173
    %v1175 = vmul.f32 %v1171, %v452
    %v1176 = vmul.f32 %v1174, %v452
    %v1177 = vadd.f32 %v1175, 1e-05
    %v1178 = vadd.f32 %v1176, 1e-05
    %v1179 = vrsqrt.pop %v1177
    %v1180 = vmul.f32 %v1179, %v1177
    %v1181 = vmul.f32 %v1180, %v1179
    %v1182 = vmul.f32 0.5, %v1181
    %v1183 = vsub.f32 1.5, %v1182
    %v1184 = vmul.f32 %v1179, %v1183
    %vm1185 = vweird.f32 %v1177
    %vm1186 = vweird.f32 %v1179
    %vm1187 = vmor %vm1185, %vm1186
    %v1188 = vsel %vm1187, %v1179, %v1184
    %v1189 = vrsqrt.pop %v1178
    %v1190 = vmul.f32 %v1189, %v1178
    %v1191 = vmul.f32 %v1190, %v1189
    %v1192 = vmul.f32 0.5, %v1191
    %v1193 = vsub.f32 1.5, %v1192
    %v1194 = vmul.f32 %v1189, %v1193
    %vm1195 = vweird.f32 %v1178
    %vm1196 = vweird.f32 %v1189
    %vm1197 = vmor %vm1195, %vm1196
    %v1198 = vsel %vm1197, %v1189, %v1194
    %v1199 = vmul.f32 %v1165, %v1188
    %v1200 = vmul.f32 %v1166, %v1198
    %v1202 = vperm.slane %v1154, 0
    %v1204 = vmul.f32 %v1199, %v1202
    %v1205 = vmul.f32 %v1200, %v1202
    %v1207 = vperm.slane %v1156, 0
    %v1209 = vadd.f32 %v1204, %v1207
    %v1210 = vadd.f32 %v1205, %v1207
    %v1211 = vld [vmem:[%s14] sm:$0xff]
    %v1212 = vld [vmem:[%s14 + $0x8] sm:$0xff]
    %v1213 = vld [vmem:[%s14 + $0x10] sm:$0xff]
    %v1214 = vld [vmem:[%s14 + $0x18] sm:$0xff]
    %v1215 = vld [vmem:[%s14 + $0x20] sm:$0xff]
    %v1216 = vld [vmem:[%s14 + $0x28] sm:$0xff]
    %v1217 = vld [vmem:[%s14 + $0x30] sm:$0xff]
    %v1218 = vld [vmem:[%s14 + $0x38] sm:$0xff]
    %v1219 = vld [vmem:[%s15] sm:$0x3]
    %v1221 = vperm.slane %v1219, 0
    %v1222 = vperm.slane %v1219, 1
    %v1227 = vrot.slane %v1210, 7
    %vm1228 = vcmask 1041409
    %v1229 = vsel %vm1228, %v1227, %v1209
    %v1230 = vsel %vm72, %v1229, 0
    %1232 = vmatpush.msra.mxu0 0.0
    %1233 = vmatpush.msra.mxu0 0.0
    %1234 = vmatpush.msra.mxu0 0.0
    %1235 = vmatpush.msra.mxu0 0.0
    %1236 = vmatpush.msra.mxu0 0.0
    %1237 = vmatpush.msra.mxu0 0.0
    %1238 = vmatpush.msra.mxu0 0.0
    %1239 = vmatpush.msra.mxu0 0.0
    %1240 = vmatpush.msra.mxu0 0.0
    %1241 = vmatpush.msra.mxu0 0.0
    %1242 = vmatpush.msra.mxu0 0.0
    %1243 = vmatpush.msra.mxu0 0.0
    %1244 = vmatpush.msra.mxu0 %v1217
    %1245 = vmatpush.msra.mxu0 %v1215
    %1246 = vmatpush.msra.mxu0 %v1213
    %1247 = vmatpush.msra.mxu0 %v1211
    %1248 = vmatmul.f32.gmra.mxu0 %v1230
    %v1249 = vpop.f32.mrf.mxu0
    %v1250 = vadd.f32 %v1221, %v1249
    %1251 = vdwg.mxu0
    %1252 = vmatpush.msra.mxu0 0.0
    %1253 = vmatpush.msra.mxu0 0.0
    %1254 = vmatpush.msra.mxu0 0.0
    %1255 = vmatpush.msra.mxu0 0.0
    %1256 = vmatpush.msra.mxu0 0.0
    %1257 = vmatpush.msra.mxu0 0.0
    %1258 = vmatpush.msra.mxu0 0.0
    %1259 = vmatpush.msra.mxu0 0.0
    %1260 = vmatpush.msra.mxu0 0.0
    %1261 = vmatpush.msra.mxu0 0.0
    %1262 = vmatpush.msra.mxu0 0.0
    %1263 = vmatpush.msra.mxu0 0.0
    %1264 = vmatpush.msra.mxu0 %v1218
    %1265 = vmatpush.msra.mxu0 %v1216
    %1266 = vmatpush.msra.mxu0 %v1214
    %1267 = vmatpush.msra.mxu0 %v1212
    %1268 = vmatmul.f32.gmra.mxu0 %v1230
    %v1269 = vpop.f32.mrf.mxu0
    %v1270 = vadd.f32 %v1222, %v1269
    %1271 = vdwg.mxu0
    %v1272 = vtanh.pop %v1250
    %v1273 = vtanh.pop %v1270
    %v1274 = vld [vmem:[%s16] sm:$0xff]
    %v1275 = vld [vmem:[%s16 + $0x8] sm:$0xff]
    %v1276 = vld [vmem:[%s16 + $0x10] sm:$0xff]
    %v1277 = vld [vmem:[%s16 + $0x18] sm:$0xff]
    %v1278 = vld [vmem:[%s16 + $0x20] sm:$0xff]
    %v1279 = vld [vmem:[%s16 + $0x28] sm:$0xff]
    %v1280 = vld [vmem:[%s16 + $0x30] sm:$0xff]
    %v1281 = vld [vmem:[%s16 + $0x38] sm:$0xff]
    %v1282 = vld [vmem:[%s16 + $0x40] sm:$0xff]
    %v1283 = vld [vmem:[%s16 + $0x48] sm:$0xff]
    %v1284 = vld [vmem:[%s16 + $0x50] sm:$0xff]
    %v1285 = vld [vmem:[%s16 + $0x58] sm:$0xff]
    %v1286 = vld [vmem:[%s16 + $0x60] sm:$0xff]
    %v1287 = vld [vmem:[%s16 + $0x68] sm:$0xff]
    %v1288 = vld [vmem:[%s16 + $0x70] sm:$0xff]
    %v1289 = vld [vmem:[%s16 + $0x78] sm:$0xff]
    %v1290 = vld [vmem:[%s16 + $0x80] sm:$0xff]
    %v1291 = vld [vmem:[%s16 + $0x88] sm:$0xff]
    %v1292 = vld [vmem:[%s16 + $0x90] sm:$0xff]
    %v1293 = vld [vmem:[%s16 + $0x98] sm:$0xff]
    %v1294 = vld [vmem:[%s16 + $0xa0] sm:$0xff]
    %v1295 = vld [vmem:[%s16 + $0xa8] sm:$0xff]
    %v1296 = vld [vmem:[%s16 + $0xb0] sm:$0xff]
    %v1297 = vld [vmem:[%s16 + $0xb8] sm:$0xff]
    %v1298 = vld [vmem:[%s16 + $0xc0] sm:$0xff]
    %v1299 = vld [vmem:[%s16 + $0xc8] sm:$0xff]
    %v1300 = vld [vmem:[%s16 + $0xd0] sm:$0xff]
    %v1301 = vld [vmem:[%s16 + $0xd8] sm:$0xff]
    %v1302 = vld [vmem:[%s16 + $0xe0] sm:$0xff]
    %v1303 = vld [vmem:[%s16 + $0xe8] sm:$0xff]
    %v1304 = vld [vmem:[%s16 + $0xf0] sm:$0xff]
    %v1305 = vld [vmem:[%s16 + $0xf8] sm:$0xff]
    %v1306 = vld [vmem:[%s17] sm:$0x1]
    %v1308 = vperm.slane %v1306, 0
    %1310 = vmatpush.msra.mxu0 %v1289
    %1311 = vmatpush.msra.mxu0 %v1288
    %1312 = vmatpush.msra.mxu0 %v1287
    %1313 = vmatpush.msra.mxu0 %v1286
    %1314 = vmatpush.msra.mxu0 %v1285
    %1315 = vmatpush.msra.mxu0 %v1284
    %1316 = vmatpush.msra.mxu0 %v1283
    %1317 = vmatpush.msra.mxu0 %v1282
    %1318 = vmatpush.msra.mxu0 %v1281
    %1319 = vmatpush.msra.mxu0 %v1280
    %1320 = vmatpush.msra.mxu0 %v1279
    %1321 = vmatpush.msra.mxu0 %v1278
    %1322 = vmatpush.msra.mxu0 %v1277
    %1323 = vmatpush.msra.mxu0 %v1276
    %1324 = vmatpush.msra.mxu0 %v1275
    %1325 = vmatpush.msra.mxu0 %v1274
    %1326 = vmatmul.f32.gmra.mxu0 %v1272
    %v1327 = vpop.f32.mrf.mxu0
    %v1328 = vadd.f32 %v1308, %v1327
    %1329 = vdwg.mxu0
    %1330 = vmatpush.msra.mxu0 %v1305
    %1331 = vmatpush.msra.mxu0 %v1304
    %1332 = vmatpush.msra.mxu0 %v1303
    %1333 = vmatpush.msra.mxu0 %v1302
    %1334 = vmatpush.msra.mxu0 %v1301
    %1335 = vmatpush.msra.mxu0 %v1300
    %1336 = vmatpush.msra.mxu0 %v1299
    %1337 = vmatpush.msra.mxu0 %v1298
    %1338 = vmatpush.msra.mxu0 %v1297
    %1339 = vmatpush.msra.mxu0 %v1296
    %1340 = vmatpush.msra.mxu0 %v1295
    %1341 = vmatpush.msra.mxu0 %v1294
    %1342 = vmatpush.msra.mxu0 %v1293
    %1343 = vmatpush.msra.mxu0 %v1292
    %1344 = vmatpush.msra.mxu0 %v1291
    %1345 = vmatpush.msra.mxu0 %v1290
    %1346 = vmatmul.f32.gmra.mxu0 %v1273
    %v1347 = vpop.f32.mrf.mxu0
    %v1348 = vadd.f32 %v1328, %v1347
    %1349 = vdwg.mxu0
    %1350 = vst [vmem:[#allocation2] sm:$0x3] %v1348
    // Predicated region
    $region74: #{bert_classifier_forward.1} parent=1 // pred_check
      _
    $region75: #{bert_classifier_forward.1} parent=1 // pred_check_branch
      %1352 = sbr.rel (0) target = $region77
    $region76: #{bert_classifier_forward.1} parent=1 // pred_region
      %1354 = vsyncadd [#allocation3], 0
      %s1356 = sshll.u32 [#allocation2], 4
      %s1357 = int_to_ptr.vmem [resolvable:$true] %s1356
      %s1358 = sshll.u32 %s18, 4
      %s1359 = int_to_ptr.hbm [resolvable:$true] %s1358
      %1361 = dma.vmem_to_hbm [thread:$0]  %s1357, 32, %s1359, [#allocation3]
    $region77: #{bert_classifier_forward.1} parent=1 // pred_fallthru
      _
    // Predicated region
    $region78: #{bert_classifier_forward.1} parent=1 // pred_check
      _
    $region79: #{bert_classifier_forward.1} parent=1 // pred_check_branch
      %1363 = sbr.rel (0) target = $region81
    $region80: #{bert_classifier_forward.1} parent=1 // pred_region
      %1365 = dma.done [#allocation3], 32
    $region81: #{bert_classifier_forward.1} parent=1 // pred_fallthru
      _
    %1366 = vsyncpa [#allocation3], 1

</llo_original>
